<compile_context>
chip_gen: v6e
topology: v6e:2x2x1
jax: 0.10.0
libtpu: 0.0.40
codegen_flags: <defaults>
</compile_context>

<pallas_src>
import math

import jax
import jax.numpy as jnp
from jax.experimental import pallas as pl
from jax.experimental.pallas import tpu as pltpu

LN_EPS = 1e-5  # nn.LayerNorm default


def _round_up(x, m):
    return ((x + m - 1) // m) * m


def _make_critic_kernel(H):
    """H = hidden_width (static)."""

    def kernel(x_ref, w1_ref, wh_ref, v_ref, w5_ref, b5_ref, out_ref):
        x = x_ref[...]  # [TB, Kp] (zero-padded concat(state, action))

        def lin_ln_relu(a, vec):
            # vec: [3, H] = [linear bias; gamma; beta]
            a = a + vec[0:1, :]
            # Two independent lane reductions -> var = E[x^2] - E[x]^2.
            mean = jnp.mean(a, axis=-1, keepdims=True)
            mean_sq = jnp.mean(a * a, axis=-1, keepdims=True)
            var = jnp.maximum(mean_sq - mean * mean, 0.0)
            a = (a - mean) * jax.lax.rsqrt(var + LN_EPS)
            return jnp.maximum(a * vec[1:2, :] + vec[2:3, :], 0.0)

        def run_head(hi):
            # Layer 1: weight stored with Kp rows (zero rows past D_in).
            a = jnp.dot(x, w1_ref[hi], preferred_element_type=jnp.float32)
            a = lin_ln_relu(a, v_ref[hi * 4 + 0])
            # Layers 2-4: exact [H, H] weights, no runtime slicing.
            for l in range(3):
                a = jnp.dot(a, wh_ref[hi * 3 + l],
                            preferred_element_type=jnp.float32)
                a = lin_ln_relu(a, v_ref[hi * 4 + l + 1])
            return a  # [TB, H]

        a_q1 = run_head(0)
        a_q2 = run_head(1)

        # Lane-dense epilogue: head-a final weight lives in column 0 of
        # w5[0], head-b final weight in column 1 of w5[1]; everything else
        # is zero, so one unmasked [TB,128] store carries both Q heads.
        q = jnp.dot(a_q1, w5_ref[0], preferred_element_type=jnp.float32)
        q = q + jnp.dot(a_q2, w5_ref[1], preferred_element_type=jnp.float32)
        out_ref[...] = q + b5_ref[...]

    return kernel


def pack_params(params, state_dim, action_dim, hidden_width):
    """Pack per-layer params into the 5 VMEM slabs consumed by the kernel."""
    D_in = state_dim + action_dim
    H = hidden_width
    Kp = _round_up(max(D_in, 8), 8)

    w1 = jnp.zeros((2, Kp, H), jnp.float32)    # [head, Kp, H]
    wh = jnp.zeros((6, H, H), jnp.float32)     # [head*3 + (layer-2), H, H]
    v = jnp.zeros((8, 3, H), jnp.float32)      # [head*4 + (layer-1), {b,g,be}, H]
    w5 = jnp.zeros((2, H, 128), jnp.float32)   # head a -> col 0, head b -> col 1
    b5 = jnp.zeros((1, 128), jnp.float32)

    for hi, tag in enumerate(("a", "b")):
        w1 = w1.at[hi, :D_in, :].set(params[f"w1{tag}"])
        for l in (2, 3, 4):
            wh = wh.at[hi * 3 + (l - 2)].set(params[f"w{l}{tag}"])
        for l in (1, 2, 3, 4):
            v = v.at[hi * 4 + (l - 1), 0, :].set(params[f"b{l}{tag}"][0])
            v = v.at[hi * 4 + (l - 1), 1, :].set(params[f"g{l}{tag}"][0])
            v = v.at[hi * 4 + (l - 1), 2, :].set(params[f"be{l}{tag}"][0])
        w5 = w5.at[hi, :, hi].set(params[f"w5{tag}"][:, 0])
        b5 = b5.at[0, hi].set(params[f"b5{tag}"][0, 0])
    return w1, wh, v, w5, b5


def critic_forward(state, action, packed, *, hidden_width):
    """state: [B, state_dim], action: [B, action_dim]. Returns (q1, q2) [B,1]."""
    w1, wh, v, w5, b5 = packed
    B = state.shape[0]
    D_in = state.shape[1] + action.shape[1]
    H = hidden_width
    Kp = w1.shape[1]

    # Batch tile: large (256) when the batch is big, else sublane-aligned.
    TB = 256 if B >= 256 else _round_up(max(B, 1), 8)
    B_pad = _round_up(B, TB)

    sa = jnp.concatenate([state, action], axis=1).astype(jnp.float32)
    sa_pad = jnp.zeros((B_pad, Kp), jnp.float32).at[:B, :D_in].set(sa)

    kernel = _make_critic_kernel(H)

    param_bytes = sum(int(a.size) for a in (w1, wh, v, w5, b5)) * 4
    cost = pl.CostEstimate(
        flops=int(2 * 2 * B_pad * (Kp * H + 3 * H * H + H * 128)),
        transcendentals=int(2 * 4 * B_pad),
        bytes_accessed=int(param_bytes + sa_pad.size * 4 + B_pad * 128 * 4),
    )

    out = pl.pallas_call(
        kernel,
        out_shape=jax.ShapeDtypeStruct((B_pad, 128), jnp.float32),
        grid=(B_pad // TB,),
        in_specs=[
            pl.BlockSpec((TB, Kp), lambda i: (i, 0)),        # activations: tiled
            pl.BlockSpec(w1.shape, lambda i: (0, 0, 0)),     # resident params
            pl.BlockSpec(wh.shape, lambda i: (0, 0, 0)),
            pl.BlockSpec(v.shape, lambda i: (0, 0, 0)),
            pl.BlockSpec(w5.shape, lambda i: (0, 0, 0)),
            pl.BlockSpec(b5.shape, lambda i: (0, 0)),
        ],
        out_specs=pl.BlockSpec((TB, 128), lambda i: (i, 0)),
        compiler_params=pltpu.CompilerParams(
            dimension_semantics=("parallel",),
        ),
        cost_estimate=cost,
    )(sa_pad, w1, wh, v, w5, b5)

    q1 = out[:B, 0:1]
    q2 = out[:B, 1:2]
    return q1, q2


def xavier_uniform(key, fan_in, fan_out):
    # torch.nn.init.xavier_uniform_ (gain=1): U(-a, a), a = sqrt(6/(fi+fo)).
    # PyTorch Linear weight is [out, in]; transpose to [in, out] for row-major matmul.
    limit = math.sqrt(6.0 / (fan_in + fan_out))
    w = jax.random.uniform(key, (fan_out, fan_in), jnp.float32, -limit, limit)
    return w.T


def init_critic_params(key, state_dim, action_dim, hidden_width):
    D_in = state_dim + action_dim
    H = hidden_width
    keys = jax.random.split(key, 10)
    params = {}
    ki = 0
    for tag in ("a", "b"):
        dims = [(D_in, H), (H, H), (H, H), (H, H), (H, 1)]
        for l, (fi, fo) in enumerate(dims, start=1):
            params[f"w{l}{tag}"] = xavier_uniform(keys[ki], fi, fo)
            ki += 1
            params[f"b{l}{tag}"] = jnp.zeros((1, fo), jnp.float32)
            if l <= 4:
                params[f"g{l}{tag}"] = jnp.ones((1, H), jnp.float32)
                params[f"be{l}{tag}"] = jnp.zeros((1, H), jnp.float32)
    return params


def critic_reference(state, action, params):
    """Pure-JAX reference of the PyTorch Critic forward (for verification)."""
    sa = jnp.concatenate([state, action], axis=1)

    def ln(a, g, b):
        mean = jnp.mean(a, axis=-1, keepdims=True)
        var = jnp.mean((a - mean) ** 2, axis=-1, keepdims=True)
        return (a - mean) / jnp.sqrt(var + LN_EPS) * g + b

    def head(tag):
        a = sa
        for l in (1, 2, 3, 4):
            a = a @ params[f"w{l}{tag}"] + params[f"b{l}{tag}"]
            a = ln(a, params[f"g{l}{tag}"], params[f"be{l}{tag}"])
            a = jnp.maximum(a, 0.0)
        return a @ params[f"w5{tag}"] + params[f"b5{tag}"]

    return head("a"), head("b")


# TODO(synk): save_checkpoint/load_checkpoint (torch file I/O) have no kernel
# equivalent and are intentionally not implemented.

if __name__ == "__main__":
    key = jax.random.PRNGKey(0)
    k_param, k_state, k_action = jax.random.split(key, 3)

    batch = 2
    state_dim = 16
    action_dim = 4
    hidden_width = 32

    params = init_critic_params(k_param, state_dim, action_dim, hidden_width)
    state = jax.random.normal(k_state, (batch, state_dim), jnp.float32)
    action = jax.random.uniform(k_action, (batch, action_dim), jnp.float32,
                                minval=-1.0, maxval=1.0)

    packed = pack_params(params, state_dim, action_dim, hidden_width)
    q1, q2 = critic_forward(state, action, packed, hidden_width=hidden_width)
    q1 = jax.block_until_ready(q1)
    q2 = jax.block_until_ready(q2)

    r1, r2 = critic_reference(state, action, params)
    assert q1.shape == (batch, 1), q1.shape
    assert q2.shape == (batch, 1), q2.shape
    assert jnp.allclose(q1, r1, atol=1e-4, rtol=1e-4), (q1, r1)
    assert jnp.allclose(q2, r2, atol=1e-4, rtol=1e-4), (q2, r2)

    print("KERNEL_OK")
</pallas_src>

<mosaic_0001>
module attributes {stable_mosaic.version = 11 : i64} {
  func.func @kernel(%arg0: i32, %arg1: memref<8x24xf32, #tpu.memory_space<vmem>>, %arg2: memref<2x24x32xf32, #tpu.memory_space<vmem>>, %arg3: memref<6x32x32xf32, #tpu.memory_space<vmem>>, %arg4: memref<8x3x32xf32, #tpu.memory_space<vmem>>, %arg5: memref<2x32x128xf32, #tpu.memory_space<vmem>>, %arg6: memref<1x128xf32, #tpu.memory_space<vmem>>, %arg7: memref<8x128xf32, #tpu.memory_space<vmem>>) attributes {dimension_semantics = [#tpu.dimension_semantics<parallel>], iteration_bounds = array<i64: 1>, scalar_prefetch = 0 : i64, scratch_operands = 0 : i64, tpu.core_type = #tpu.core_type<tc>, window_params = [{transform_indices = @transform_0, window_bounds = array<i64: 8, 24>}, {pipeline_mode = #tpu.pipeline_mode<synchronous>, transform_indices = @transform_1, window_bounds = array<i64: 2, 24, 32>}, {pipeline_mode = #tpu.pipeline_mode<synchronous>, transform_indices = @transform_2, window_bounds = array<i64: 6, 32, 32>}, {pipeline_mode = #tpu.pipeline_mode<synchronous>, transform_indices = @transform_3, window_bounds = array<i64: 8, 3, 32>}, {pipeline_mode = #tpu.pipeline_mode<synchronous>, transform_indices = @transform_4, window_bounds = array<i64: 2, 32, 128>}, {pipeline_mode = #tpu.pipeline_mode<synchronous>, transform_indices = @transform_5, window_bounds = array<i64: 1, 128>}, {transform_indices = @transform_6, window_bounds = array<i64: 8, 128>}]} {
    %c0 = arith.constant 0 : index
    %c0_0 = arith.constant 0 : index
    %0 = vector.load %arg1[%c0, %c0_0] : memref<8x24xf32, #tpu.memory_space<vmem>>, vector<8x24xf32>
    %c0_1 = arith.constant 0 : index
    %c0_2 = arith.constant 0 : index
    %c0_3 = arith.constant 0 : index
    %1 = vector.load %arg2[%c0_1, %c0_2, %c0_3] : memref<2x24x32xf32, #tpu.memory_space<vmem>>, vector<1x24x32xf32>
    %2 = vector.shape_cast %1 : vector<1x24x32xf32> to vector<24x32xf32>
    %cst = arith.constant dense<0.000000e+00> : vector<8x32xf32>
    %3 = tpu.matmul %0, %2, %cst {dimension_numbers = #tpu.dot_dimension_numbers<[1], [0], [0], [1], [0, 0, 1, 1], [], []>} : vector<8x24xf32>, vector<24x32xf32>, vector<8x32xf32> -> vector<8x32xf32>
    %c0_4 = arith.constant 0 : index
    %c0_5 = arith.constant 0 : index
    %c0_6 = arith.constant 0 : index
    %4 = vector.load %arg4[%c0_4, %c0_5, %c0_6] : memref<8x3x32xf32, #tpu.memory_space<vmem>>, vector<1x3x32xf32>
    %5 = vector.shape_cast %4 : vector<1x3x32xf32> to vector<3x32xf32>
    %6 = vector.extract_strided_slice %5 {offsets = [0, 0], sizes = [1, 32], strides = [1, 1]} : vector<3x32xf32> to vector<1x32xf32>
    %7 = vector.broadcast %6 : vector<1x32xf32> to vector<8x32xf32>
    %8 = arith.addf %3, %7 : vector<8x32xf32>
    %cst_7 = arith.constant dense<0.000000e+00> : vector<8xf32>
    %9 = vector.multi_reduction <add>, %8, %cst_7 [1] : vector<8x32xf32> to vector<8xf32>
    %10 = vector.shape_cast %9 : vector<8xf32> to vector<8x1xf32>
    %cst_8 = arith.constant 3.200000e+01 : f32
    %11 = vector.broadcast %cst_8 : f32 to vector<8x1xf32>
    %12 = arith.divf %10, %11 : vector<8x1xf32>
    %13 = arith.mulf %8, %8 : vector<8x32xf32>
    %cst_9 = arith.constant dense<0.000000e+00> : vector<8xf32>
    %14 = vector.multi_reduction <add>, %13, %cst_9 [1] : vector<8x32xf32> to vector<8xf32>
    %15 = vector.shape_cast %14 : vector<8xf32> to vector<8x1xf32>
    %cst_10 = arith.constant 3.200000e+01 : f32
    %16 = vector.broadcast %cst_10 : f32 to vector<8x1xf32>
    %17 = arith.divf %15, %16 : vector<8x1xf32>
    %18 = arith.mulf %12, %12 : vector<8x1xf32>
    %19 = arith.subf %17, %18 : vector<8x1xf32>
    %cst_11 = arith.constant 0.000000e+00 : f32
    %20 = vector.broadcast %cst_11 : f32 to vector<8x1xf32>
    %21 = arith.maximumf %19, %20 : vector<8x1xf32>
    %22 = vector.broadcast %12 : vector<8x1xf32> to vector<8x32xf32>
    %23 = arith.subf %8, %22 : vector<8x32xf32>
    %cst_12 = arith.constant 9.99999974E-6 : f32
    %24 = vector.broadcast %cst_12 : f32 to vector<8x1xf32>
    %25 = arith.addf %21, %24 : vector<8x1xf32>
    %26 = math.rsqrt %25 : vector<8x1xf32>
    %27 = vector.broadcast %26 : vector<8x1xf32> to vector<8x32xf32>
    %28 = arith.mulf %23, %27 : vector<8x32xf32>
    %29 = vector.extract_strided_slice %5 {offsets = [1, 0], sizes = [1, 32], strides = [1, 1]} : vector<3x32xf32> to vector<1x32xf32>
    %30 = vector.broadcast %29 : vector<1x32xf32> to vector<8x32xf32>
    %31 = arith.mulf %28, %30 : vector<8x32xf32>
    %32 = vector.extract_strided_slice %5 {offsets = [2, 0], sizes = [1, 32], strides = [1, 1]} : vector<3x32xf32> to vector<1x32xf32>
    %33 = vector.broadcast %32 : vector<1x32xf32> to vector<8x32xf32>
    %34 = arith.addf %31, %33 : vector<8x32xf32>
    %cst_13 = arith.constant 0.000000e+00 : f32
    %35 = vector.broadcast %cst_13 : f32 to vector<8x32xf32>
    %36 = arith.maximumf %34, %35 : vector<8x32xf32>
    %c0_14 = arith.constant 0 : index
    %c0_15 = arith.constant 0 : index
    %c0_16 = arith.constant 0 : index
    %37 = vector.load %arg3[%c0_14, %c0_15, %c0_16] : memref<6x32x32xf32, #tpu.memory_space<vmem>>, vector<1x32x32xf32>
    %38 = vector.shape_cast %37 : vector<1x32x32xf32> to vector<32x32xf32>
    %cst_17 = arith.constant dense<0.000000e+00> : vector<8x32xf32>
    %39 = tpu.matmul %36, %38, %cst_17 {dimension_numbers = #tpu.dot_dimension_numbers<[1], [0], [0], [1], [0, 0, 1, 1], [], []>} : vector<8x32xf32>, vector<32x32xf32>, vector<8x32xf32> -> vector<8x32xf32>
    %c1 = arith.constant 1 : index
    %c0_18 = arith.constant 0 : index
    %c0_19 = arith.constant 0 : index
    %40 = vector.load %arg4[%c1, %c0_18, %c0_19] : memref<8x3x32xf32, #tpu.memory_space<vmem>>, vector<1x3x32xf32>
    %41 = vector.shape_cast %40 : vector<1x3x32xf32> to vector<3x32xf32>
    %42 = vector.extract_strided_slice %41 {offsets = [0, 0], sizes = [1, 32], strides = [1, 1]} : vector<3x32xf32> to vector<1x32xf32>
    %43 = vector.broadcast %42 : vector<1x32xf32> to vector<8x32xf32>
    %44 = arith.addf %39, %43 : vector<8x32xf32>
    %cst_20 = arith.constant dense<0.000000e+00> : vector<8xf32>
    %45 = vector.multi_reduction <add>, %44, %cst_20 [1] : vector<8x32xf32> to vector<8xf32>
    %46 = vector.shape_cast %45 : vector<8xf32> to vector<8x1xf32>
    %cst_21 = arith.constant 3.200000e+01 : f32
    %47 = vector.broadcast %cst_21 : f32 to vector<8x1xf32>
    %48 = arith.divf %46, %47 : vector<8x1xf32>
    %49 = arith.mulf %44, %44 : vector<8x32xf32>
    %cst_22 = arith.constant dense<0.000000e+00> : vector<8xf32>
    %50 = vector.multi_reduction <add>, %49, %cst_22 [1] : vector<8x32xf32> to vector<8xf32>
    %51 = vector.shape_cast %50 : vector<8xf32> to vector<8x1xf32>
    %cst_23 = arith.constant 3.200000e+01 : f32
    %52 = vector.broadcast %cst_23 : f32 to vector<8x1xf32>
    %53 = arith.divf %51, %52 : vector<8x1xf32>
    %54 = arith.mulf %48, %48 : vector<8x1xf32>
    %55 = arith.subf %53, %54 : vector<8x1xf32>
    %cst_24 = arith.constant 0.000000e+00 : f32
    %56 = vector.broadcast %cst_24 : f32 to vector<8x1xf32>
    %57 = arith.maximumf %55, %56 : vector<8x1xf32>
    %58 = vector.broadcast %48 : vector<8x1xf32> to vector<8x32xf32>
    %59 = arith.subf %44, %58 : vector<8x32xf32>
    %cst_25 = arith.constant 9.99999974E-6 : f32
    %60 = vector.broadcast %cst_25 : f32 to vector<8x1xf32>
    %61 = arith.addf %57, %60 : vector<8x1xf32>
    %62 = math.rsqrt %61 : vector<8x1xf32>
    %63 = vector.broadcast %62 : vector<8x1xf32> to vector<8x32xf32>
    %64 = arith.mulf %59, %63 : vector<8x32xf32>
    %65 = vector.extract_strided_slice %41 {offsets = [1, 0], sizes = [1, 32], strides = [1, 1]} : vector<3x32xf32> to vector<1x32xf32>
    %66 = vector.broadcast %65 : vector<1x32xf32> to vector<8x32xf32>
    %67 = arith.mulf %64, %66 : vector<8x32xf32>
    %68 = vector.extract_strided_slice %41 {offsets = [2, 0], sizes = [1, 32], strides = [1, 1]} : vector<3x32xf32> to vector<1x32xf32>
    %69 = vector.broadcast %68 : vector<1x32xf32> to vector<8x32xf32>
    %70 = arith.addf %67, %69 : vector<8x32xf32>
    %cst_26 = arith.constant 0.000000e+00 : f32
    %71 = vector.broadcast %cst_26 : f32 to vector<8x32xf32>
    %72 = arith.maximumf %70, %71 : vector<8x32xf32>
    %c1_27 = arith.constant 1 : index
    %c0_28 = arith.constant 0 : index
    %c0_29 = arith.constant 0 : index
    %73 = vector.load %arg3[%c1_27, %c0_28, %c0_29] : memref<6x32x32xf32, #tpu.memory_space<vmem>>, vector<1x32x32xf32>
    %74 = vector.shape_cast %73 : vector<1x32x32xf32> to vector<32x32xf32>
    %cst_30 = arith.constant dense<0.000000e+00> : vector<8x32xf32>
    %75 = tpu.matmul %72, %74, %cst_30 {dimension_numbers = #tpu.dot_dimension_numbers<[1], [0], [0], [1], [0, 0, 1, 1], [], []>} : vector<8x32xf32>, vector<32x32xf32>, vector<8x32xf32> -> vector<8x32xf32>
    %c2 = arith.constant 2 : index
    %c0_31 = arith.constant 0 : index
    %c0_32 = arith.constant 0 : index
    %76 = vector.load %arg4[%c2, %c0_31, %c0_32] : memref<8x3x32xf32, #tpu.memory_space<vmem>>, vector<1x3x32xf32>
    %77 = vector.shape_cast %76 : vector<1x3x32xf32> to vector<3x32xf32>
    %78 = vector.extract_strided_slice %77 {offsets = [0, 0], sizes = [1, 32], strides = [1, 1]} : vector<3x32xf32> to vector<1x32xf32>
    %79 = vector.broadcast %78 : vector<1x32xf32> to vector<8x32xf32>
    %80 = arith.addf %75, %79 : vector<8x32xf32>
    %cst_33 = arith.constant dense<0.000000e+00> : vector<8xf32>
    %81 = vector.multi_reduction <add>, %80, %cst_33 [1] : vector<8x32xf32> to vector<8xf32>
    %82 = vector.shape_cast %81 : vector<8xf32> to vector<8x1xf32>
    %cst_34 = arith.constant 3.200000e+01 : f32
    %83 = vector.broadcast %cst_34 : f32 to vector<8x1xf32>
    %84 = arith.divf %82, %83 : vector<8x1xf32>
    %85 = arith.mulf %80, %80 : vector<8x32xf32>
    %cst_35 = arith.constant dense<0.000000e+00> : vector<8xf32>
    %86 = vector.multi_reduction <add>, %85, %cst_35 [1] : vector<8x32xf32> to vector<8xf32>
    %87 = vector.shape_cast %86 : vector<8xf32> to vector<8x1xf32>
    %cst_36 = arith.constant 3.200000e+01 : f32
    %88 = vector.broadcast %cst_36 : f32 to vector<8x1xf32>
    %89 = arith.divf %87, %88 : vector<8x1xf32>
    %90 = arith.mulf %84, %84 : vector<8x1xf32>
    %91 = arith.subf %89, %90 : vector<8x1xf32>
    %cst_37 = arith.constant 0.000000e+00 : f32
    %92 = vector.broadcast %cst_37 : f32 to vector<8x1xf32>
    %93 = arith.maximumf %91, %92 : vector<8x1xf32>
    %94 = vector.broadcast %84 : vector<8x1xf32> to vector<8x32xf32>
    %95 = arith.subf %80, %94 : vector<8x32xf32>
    %cst_38 = arith.constant 9.99999974E-6 : f32
    %96 = vector.broadcast %cst_38 : f32 to vector<8x1xf32>
    %97 = arith.addf %93, %96 : vector<8x1xf32>
    %98 = math.rsqrt %97 : vector<8x1xf32>
    %99 = vector.broadcast %98 : vector<8x1xf32> to vector<8x32xf32>
    %100 = arith.mulf %95, %99 : vector<8x32xf32>
    %101 = vector.extract_strided_slice %77 {offsets = [1, 0], sizes = [1, 32], strides = [1, 1]} : vector<3x32xf32> to vector<1x32xf32>
    %102 = vector.broadcast %101 : vector<1x32xf32> to vector<8x32xf32>
    %103 = arith.mulf %100, %102 : vector<8x32xf32>
    %104 = vector.extract_strided_slice %77 {offsets = [2, 0], sizes = [1, 32], strides = [1, 1]} : vector<3x32xf32> to vector<1x32xf32>
    %105 = vector.broadcast %104 : vector<1x32xf32> to vector<8x32xf32>
    %106 = arith.addf %103, %105 : vector<8x32xf32>
    %cst_39 = arith.constant 0.000000e+00 : f32
    %107 = vector.broadcast %cst_39 : f32 to vector<8x32xf32>
    %108 = arith.maximumf %106, %107 : vector<8x32xf32>
    %c2_40 = arith.constant 2 : index
    %c0_41 = arith.constant 0 : index
    %c0_42 = arith.constant 0 : index
    %109 = vector.load %arg3[%c2_40, %c0_41, %c0_42] : memref<6x32x32xf32, #tpu.memory_space<vmem>>, vector<1x32x32xf32>
    %110 = vector.shape_cast %109 : vector<1x32x32xf32> to vector<32x32xf32>
    %cst_43 = arith.constant dense<0.000000e+00> : vector<8x32xf32>
    %111 = tpu.matmul %108, %110, %cst_43 {dimension_numbers = #tpu.dot_dimension_numbers<[1], [0], [0], [1], [0, 0, 1, 1], [], []>} : vector<8x32xf32>, vector<32x32xf32>, vector<8x32xf32> -> vector<8x32xf32>
    %c3 = arith.constant 3 : index
    %c0_44 = arith.constant 0 : index
    %c0_45 = arith.constant 0 : index
    %112 = vector.load %arg4[%c3, %c0_44, %c0_45] : memref<8x3x32xf32, #tpu.memory_space<vmem>>, vector<1x3x32xf32>
    %113 = vector.shape_cast %112 : vector<1x3x32xf32> to vector<3x32xf32>
    %114 = vector.extract_strided_slice %113 {offsets = [0, 0], sizes = [1, 32], strides = [1, 1]} : vector<3x32xf32> to vector<1x32xf32>
    %115 = vector.broadcast %114 : vector<1x32xf32> to vector<8x32xf32>
    %116 = arith.addf %111, %115 : vector<8x32xf32>
    %cst_46 = arith.constant dense<0.000000e+00> : vector<8xf32>
    %117 = vector.multi_reduction <add>, %116, %cst_46 [1] : vector<8x32xf32> to vector<8xf32>
    %118 = vector.shape_cast %117 : vector<8xf32> to vector<8x1xf32>
    %cst_47 = arith.constant 3.200000e+01 : f32
    %119 = vector.broadcast %cst_47 : f32 to vector<8x1xf32>
    %120 = arith.divf %118, %119 : vector<8x1xf32>
    %121 = arith.mulf %116, %116 : vector<8x32xf32>
    %cst_48 = arith.constant dense<0.000000e+00> : vector<8xf32>
    %122 = vector.multi_reduction <add>, %121, %cst_48 [1] : vector<8x32xf32> to vector<8xf32>
    %123 = vector.shape_cast %122 : vector<8xf32> to vector<8x1xf32>
    %cst_49 = arith.constant 3.200000e+01 : f32
    %124 = vector.broadcast %cst_49 : f32 to vector<8x1xf32>
    %125 = arith.divf %123, %124 : vector<8x1xf32>
    %126 = arith.mulf %120, %120 : vector<8x1xf32>
    %127 = arith.subf %125, %126 : vector<8x1xf32>
    %cst_50 = arith.constant 0.000000e+00 : f32
    %128 = vector.broadcast %cst_50 : f32 to vector<8x1xf32>
    %129 = arith.maximumf %127, %128 : vector<8x1xf32>
    %130 = vector.broadcast %120 : vector<8x1xf32> to vector<8x32xf32>
    %131 = arith.subf %116, %130 : vector<8x32xf32>
    %cst_51 = arith.constant 9.99999974E-6 : f32
    %132 = vector.broadcast %cst_51 : f32 to vector<8x1xf32>
    %133 = arith.addf %129, %132 : vector<8x1xf32>
    %134 = math.rsqrt %133 : vector<8x1xf32>
    %135 = vector.broadcast %134 : vector<8x1xf32> to vector<8x32xf32>
    %136 = arith.mulf %131, %135 : vector<8x32xf32>
    %137 = vector.extract_strided_slice %113 {offsets = [1, 0], sizes = [1, 32], strides = [1, 1]} : vector<3x32xf32> to vector<1x32xf32>
    %138 = vector.broadcast %137 : vector<1x32xf32> to vector<8x32xf32>
    %139 = arith.mulf %136, %138 : vector<8x32xf32>
    %140 = vector.extract_strided_slice %113 {offsets = [2, 0], sizes = [1, 32], strides = [1, 1]} : vector<3x32xf32> to vector<1x32xf32>
    %141 = vector.broadcast %140 : vector<1x32xf32> to vector<8x32xf32>
    %142 = arith.addf %139, %141 : vector<8x32xf32>
    %cst_52 = arith.constant 0.000000e+00 : f32
    %143 = vector.broadcast %cst_52 : f32 to vector<8x32xf32>
    %144 = arith.maximumf %142, %143 : vector<8x32xf32>
    %c1_53 = arith.constant 1 : index
    %c0_54 = arith.constant 0 : index
    %c0_55 = arith.constant 0 : index
    %145 = vector.load %arg2[%c1_53, %c0_54, %c0_55] : memref<2x24x32xf32, #tpu.memory_space<vmem>>, vector<1x24x32xf32>
    %146 = vector.shape_cast %145 : vector<1x24x32xf32> to vector<24x32xf32>
    %cst_56 = arith.constant dense<0.000000e+00> : vector<8x32xf32>
    %147 = tpu.matmul %0, %146, %cst_56 {dimension_numbers = #tpu.dot_dimension_numbers<[1], [0], [0], [1], [0, 0, 1, 1], [], []>} : vector<8x24xf32>, vector<24x32xf32>, vector<8x32xf32> -> vector<8x32xf32>
    %c4 = arith.constant 4 : index
    %c0_57 = arith.constant 0 : index
    %c0_58 = arith.constant 0 : index
    %148 = vector.load %arg4[%c4, %c0_57, %c0_58] : memref<8x3x32xf32, #tpu.memory_space<vmem>>, vector<1x3x32xf32>
    %149 = vector.shape_cast %148 : vector<1x3x32xf32> to vector<3x32xf32>
    %150 = vector.extract_strided_slice %149 {offsets = [0, 0], sizes = [1, 32], strides = [1, 1]} : vector<3x32xf32> to vector<1x32xf32>
    %151 = vector.broadcast %150 : vector<1x32xf32> to vector<8x32xf32>
    %152 = arith.addf %147, %151 : vector<8x32xf32>
    %cst_59 = arith.constant dense<0.000000e+00> : vector<8xf32>
    %153 = vector.multi_reduction <add>, %152, %cst_59 [1] : vector<8x32xf32> to vector<8xf32>
    %154 = vector.shape_cast %153 : vector<8xf32> to vector<8x1xf32>
    %cst_60 = arith.constant 3.200000e+01 : f32
    %155 = vector.broadcast %cst_60 : f32 to vector<8x1xf32>
    %156 = arith.divf %154, %155 : vector<8x1xf32>
    %157 = arith.mulf %152, %152 : vector<8x32xf32>
    %cst_61 = arith.constant dense<0.000000e+00> : vector<8xf32>
    %158 = vector.multi_reduction <add>, %157, %cst_61 [1] : vector<8x32xf32> to vector<8xf32>
    %159 = vector.shape_cast %158 : vector<8xf32> to vector<8x1xf32>
    %cst_62 = arith.constant 3.200000e+01 : f32
    %160 = vector.broadcast %cst_62 : f32 to vector<8x1xf32>
    %161 = arith.divf %159, %160 : vector<8x1xf32>
    %162 = arith.mulf %156, %156 : vector<8x1xf32>
    %163 = arith.subf %161, %162 : vector<8x1xf32>
    %cst_63 = arith.constant 0.000000e+00 : f32
    %164 = vector.broadcast %cst_63 : f32 to vector<8x1xf32>
    %165 = arith.maximumf %163, %164 : vector<8x1xf32>
    %166 = vector.broadcast %156 : vector<8x1xf32> to vector<8x32xf32>
    %167 = arith.subf %152, %166 : vector<8x32xf32>
    %cst_64 = arith.constant 9.99999974E-6 : f32
    %168 = vector.broadcast %cst_64 : f32 to vector<8x1xf32>
    %169 = arith.addf %165, %168 : vector<8x1xf32>
    %170 = math.rsqrt %169 : vector<8x1xf32>
    %171 = vector.broadcast %170 : vector<8x1xf32> to vector<8x32xf32>
    %172 = arith.mulf %167, %171 : vector<8x32xf32>
    %173 = vector.extract_strided_slice %149 {offsets = [1, 0], sizes = [1, 32], strides = [1, 1]} : vector<3x32xf32> to vector<1x32xf32>
    %174 = vector.broadcast %173 : vector<1x32xf32> to vector<8x32xf32>
    %175 = arith.mulf %172, %174 : vector<8x32xf32>
    %176 = vector.extract_strided_slice %149 {offsets = [2, 0], sizes = [1, 32], strides = [1, 1]} : vector<3x32xf32> to vector<1x32xf32>
    %177 = vector.broadcast %176 : vector<1x32xf32> to vector<8x32xf32>
    %178 = arith.addf %175, %177 : vector<8x32xf32>
    %cst_65 = arith.constant 0.000000e+00 : f32
    %179 = vector.broadcast %cst_65 : f32 to vector<8x32xf32>
    %180 = arith.maximumf %178, %179 : vector<8x32xf32>
    %c3_66 = arith.constant 3 : index
    %c0_67 = arith.constant 0 : index
    %c0_68 = arith.constant 0 : index
    %181 = vector.load %arg3[%c3_66, %c0_67, %c0_68] : memref<6x32x32xf32, #tpu.memory_space<vmem>>, vector<1x32x32xf32>
    %182 = vector.shape_cast %181 : vector<1x32x32xf32> to vector<32x32xf32>
    %cst_69 = arith.constant dense<0.000000e+00> : vector<8x32xf32>
    %183 = tpu.matmul %180, %182, %cst_69 {dimension_numbers = #tpu.dot_dimension_numbers<[1], [0], [0], [1], [0, 0, 1, 1], [], []>} : vector<8x32xf32>, vector<32x32xf32>, vector<8x32xf32> -> vector<8x32xf32>
    %c5 = arith.constant 5 : index
    %c0_70 = arith.constant 0 : index
    %c0_71 = arith.constant 0 : index
    %184 = vector.load %arg4[%c5, %c0_70, %c0_71] : memref<8x3x32xf32, #tpu.memory_space<vmem>>, vector<1x3x32xf32>
    %185 = vector.shape_cast %184 : vector<1x3x32xf32> to vector<3x32xf32>
    %186 = vector.extract_strided_slice %185 {offsets = [0, 0], sizes = [1, 32], strides = [1, 1]} : vector<3x32xf32> to vector<1x32xf32>
    %187 = vector.broadcast %186 : vector<1x32xf32> to vector<8x32xf32>
    %188 = arith.addf %183, %187 : vector<8x32xf32>
    %cst_72 = arith.constant dense<0.000000e+00> : vector<8xf32>
    %189 = vector.multi_reduction <add>, %188, %cst_72 [1] : vector<8x32xf32> to vector<8xf32>
    %190 = vector.shape_cast %189 : vector<8xf32> to vector<8x1xf32>
    %cst_73 = arith.constant 3.200000e+01 : f32
    %191 = vector.broadcast %cst_73 : f32 to vector<8x1xf32>
    %192 = arith.divf %190, %191 : vector<8x1xf32>
    %193 = arith.mulf %188, %188 : vector<8x32xf32>
    %cst_74 = arith.constant dense<0.000000e+00> : vector<8xf32>
    %194 = vector.multi_reduction <add>, %193, %cst_74 [1] : vector<8x32xf32> to vector<8xf32>
    %195 = vector.shape_cast %194 : vector<8xf32> to vector<8x1xf32>
    %cst_75 = arith.constant 3.200000e+01 : f32
    %196 = vector.broadcast %cst_75 : f32 to vector<8x1xf32>
    %197 = arith.divf %195, %196 : vector<8x1xf32>
    %198 = arith.mulf %192, %192 : vector<8x1xf32>
    %199 = arith.subf %197, %198 : vector<8x1xf32>
    %cst_76 = arith.constant 0.000000e+00 : f32
    %200 = vector.broadcast %cst_76 : f32 to vector<8x1xf32>
    %201 = arith.maximumf %199, %200 : vector<8x1xf32>
    %202 = vector.broadcast %192 : vector<8x1xf32> to vector<8x32xf32>
    %203 = arith.subf %188, %202 : vector<8x32xf32>
    %cst_77 = arith.constant 9.99999974E-6 : f32
    %204 = vector.broadcast %cst_77 : f32 to vector<8x1xf32>
    %205 = arith.addf %201, %204 : vector<8x1xf32>
    %206 = math.rsqrt %205 : vector<8x1xf32>
    %207 = vector.broadcast %206 : vector<8x1xf32> to vector<8x32xf32>
    %208 = arith.mulf %203, %207 : vector<8x32xf32>
    %209 = vector.extract_strided_slice %185 {offsets = [1, 0], sizes = [1, 32], strides = [1, 1]} : vector<3x32xf32> to vector<1x32xf32>
    %210 = vector.broadcast %209 : vector<1x32xf32> to vector<8x32xf32>
    %211 = arith.mulf %208, %210 : vector<8x32xf32>
    %212 = vector.extract_strided_slice %185 {offsets = [2, 0], sizes = [1, 32], strides = [1, 1]} : vector<3x32xf32> to vector<1x32xf32>
    %213 = vector.broadcast %212 : vector<1x32xf32> to vector<8x32xf32>
    %214 = arith.addf %211, %213 : vector<8x32xf32>
    %cst_78 = arith.constant 0.000000e+00 : f32
    %215 = vector.broadcast %cst_78 : f32 to vector<8x32xf32>
    %216 = arith.maximumf %214, %215 : vector<8x32xf32>
    %c4_79 = arith.constant 4 : index
    %c0_80 = arith.constant 0 : index
    %c0_81 = arith.constant 0 : index
    %217 = vector.load %arg3[%c4_79, %c0_80, %c0_81] : memref<6x32x32xf32, #tpu.memory_space<vmem>>, vector<1x32x32xf32>
    %218 = vector.shape_cast %217 : vector<1x32x32xf32> to vector<32x32xf32>
    %cst_82 = arith.constant dense<0.000000e+00> : vector<8x32xf32>
    %219 = tpu.matmul %216, %218, %cst_82 {dimension_numbers = #tpu.dot_dimension_numbers<[1], [0], [0], [1], [0, 0, 1, 1], [], []>} : vector<8x32xf32>, vector<32x32xf32>, vector<8x32xf32> -> vector<8x32xf32>
    %c6 = arith.constant 6 : index
    %c0_83 = arith.constant 0 : index
    %c0_84 = arith.constant 0 : index
    %220 = vector.load %arg4[%c6, %c0_83, %c0_84] : memref<8x3x32xf32, #tpu.memory_space<vmem>>, vector<1x3x32xf32>
    %221 = vector.shape_cast %220 : vector<1x3x32xf32> to vector<3x32xf32>
    %222 = vector.extract_strided_slice %221 {offsets = [0, 0], sizes = [1, 32], strides = [1, 1]} : vector<3x32xf32> to vector<1x32xf32>
    %223 = vector.broadcast %222 : vector<1x32xf32> to vector<8x32xf32>
    %224 = arith.addf %219, %223 : vector<8x32xf32>
    %cst_85 = arith.constant dense<0.000000e+00> : vector<8xf32>
    %225 = vector.multi_reduction <add>, %224, %cst_85 [1] : vector<8x32xf32> to vector<8xf32>
    %226 = vector.shape_cast %225 : vector<8xf32> to vector<8x1xf32>
    %cst_86 = arith.constant 3.200000e+01 : f32
    %227 = vector.broadcast %cst_86 : f32 to vector<8x1xf32>
    %228 = arith.divf %226, %227 : vector<8x1xf32>
    %229 = arith.mulf %224, %224 : vector<8x32xf32>
    %cst_87 = arith.constant dense<0.000000e+00> : vector<8xf32>
    %230 = vector.multi_reduction <add>, %229, %cst_87 [1] : vector<8x32xf32> to vector<8xf32>
    %231 = vector.shape_cast %230 : vector<8xf32> to vector<8x1xf32>
    %cst_88 = arith.constant 3.200000e+01 : f32
    %232 = vector.broadcast %cst_88 : f32 to vector<8x1xf32>
    %233 = arith.divf %231, %232 : vector<8x1xf32>
    %234 = arith.mulf %228, %228 : vector<8x1xf32>
    %235 = arith.subf %233, %234 : vector<8x1xf32>
    %cst_89 = arith.constant 0.000000e+00 : f32
    %236 = vector.broadcast %cst_89 : f32 to vector<8x1xf32>
    %237 = arith.maximumf %235, %236 : vector<8x1xf32>
    %238 = vector.broadcast %228 : vector<8x1xf32> to vector<8x32xf32>
    %239 = arith.subf %224, %238 : vector<8x32xf32>
    %cst_90 = arith.constant 9.99999974E-6 : f32
    %240 = vector.broadcast %cst_90 : f32 to vector<8x1xf32>
    %241 = arith.addf %237, %240 : vector<8x1xf32>
    %242 = math.rsqrt %241 : vector<8x1xf32>
    %243 = vector.broadcast %242 : vector<8x1xf32> to vector<8x32xf32>
    %244 = arith.mulf %239, %243 : vector<8x32xf32>
    %245 = vector.extract_strided_slice %221 {offsets = [1, 0], sizes = [1, 32], strides = [1, 1]} : vector<3x32xf32> to vector<1x32xf32>
    %246 = vector.broadcast %245 : vector<1x32xf32> to vector<8x32xf32>
    %247 = arith.mulf %244, %246 : vector<8x32xf32>
    %248 = vector.extract_strided_slice %221 {offsets = [2, 0], sizes = [1, 32], strides = [1, 1]} : vector<3x32xf32> to vector<1x32xf32>
    %249 = vector.broadcast %248 : vector<1x32xf32> to vector<8x32xf32>
    %250 = arith.addf %247, %249 : vector<8x32xf32>
    %cst_91 = arith.constant 0.000000e+00 : f32
    %251 = vector.broadcast %cst_91 : f32 to vector<8x32xf32>
    %252 = arith.maximumf %250, %251 : vector<8x32xf32>
    %c5_92 = arith.constant 5 : index
    %c0_93 = arith.constant 0 : index
    %c0_94 = arith.constant 0 : index
    %253 = vector.load %arg3[%c5_92, %c0_93, %c0_94] : memref<6x32x32xf32, #tpu.memory_space<vmem>>, vector<1x32x32xf32>
    %254 = vector.shape_cast %253 : vector<1x32x32xf32> to vector<32x32xf32>
    %cst_95 = arith.constant dense<0.000000e+00> : vector<8x32xf32>
    %255 = tpu.matmul %252, %254, %cst_95 {dimension_numbers = #tpu.dot_dimension_numbers<[1], [0], [0], [1], [0, 0, 1, 1], [], []>} : vector<8x32xf32>, vector<32x32xf32>, vector<8x32xf32> -> vector<8x32xf32>
    %c7 = arith.constant 7 : index
    %c0_96 = arith.constant 0 : index
    %c0_97 = arith.constant 0 : index
    %256 = vector.load %arg4[%c7, %c0_96, %c0_97] : memref<8x3x32xf32, #tpu.memory_space<vmem>>, vector<1x3x32xf32>
    %257 = vector.shape_cast %256 : vector<1x3x32xf32> to vector<3x32xf32>
    %258 = vector.extract_strided_slice %257 {offsets = [0, 0], sizes = [1, 32], strides = [1, 1]} : vector<3x32xf32> to vector<1x32xf32>
    %259 = vector.broadcast %258 : vector<1x32xf32> to vector<8x32xf32>
    %260 = arith.addf %255, %259 : vector<8x32xf32>
    %cst_98 = arith.constant dense<0.000000e+00> : vector<8xf32>
    %261 = vector.multi_reduction <add>, %260, %cst_98 [1] : vector<8x32xf32> to vector<8xf32>
    %262 = vector.shape_cast %261 : vector<8xf32> to vector<8x1xf32>
    %cst_99 = arith.constant 3.200000e+01 : f32
    %263 = vector.broadcast %cst_99 : f32 to vector<8x1xf32>
    %264 = arith.divf %262, %263 : vector<8x1xf32>
    %265 = arith.mulf %260, %260 : vector<8x32xf32>
    %cst_100 = arith.constant dense<0.000000e+00> : vector<8xf32>
    %266 = vector.multi_reduction <add>, %265, %cst_100 [1] : vector<8x32xf32> to vector<8xf32>
    %267 = vector.shape_cast %266 : vector<8xf32> to vector<8x1xf32>
    %cst_101 = arith.constant 3.200000e+01 : f32
    %268 = vector.broadcast %cst_101 : f32 to vector<8x1xf32>
    %269 = arith.divf %267, %268 : vector<8x1xf32>
    %270 = arith.mulf %264, %264 : vector<8x1xf32>
    %271 = arith.subf %269, %270 : vector<8x1xf32>
    %cst_102 = arith.constant 0.000000e+00 : f32
    %272 = vector.broadcast %cst_102 : f32 to vector<8x1xf32>
    %273 = arith.maximumf %271, %272 : vector<8x1xf32>
    %274 = vector.broadcast %264 : vector<8x1xf32> to vector<8x32xf32>
    %275 = arith.subf %260, %274 : vector<8x32xf32>
    %cst_103 = arith.constant 9.99999974E-6 : f32
    %276 = vector.broadcast %cst_103 : f32 to vector<8x1xf32>
    %277 = arith.addf %273, %276 : vector<8x1xf32>
    %278 = math.rsqrt %277 : vector<8x1xf32>
    %279 = vector.broadcast %278 : vector<8x1xf32> to vector<8x32xf32>
    %280 = arith.mulf %275, %279 : vector<8x32xf32>
    %281 = vector.extract_strided_slice %257 {offsets = [1, 0], sizes = [1, 32], strides = [1, 1]} : vector<3x32xf32> to vector<1x32xf32>
    %282 = vector.broadcast %281 : vector<1x32xf32> to vector<8x32xf32>
    %283 = arith.mulf %280, %282 : vector<8x32xf32>
    %284 = vector.extract_strided_slice %257 {offsets = [2, 0], sizes = [1, 32], strides = [1, 1]} : vector<3x32xf32> to vector<1x32xf32>
    %285 = vector.broadcast %284 : vector<1x32xf32> to vector<8x32xf32>
    %286 = arith.addf %283, %285 : vector<8x32xf32>
    %cst_104 = arith.constant 0.000000e+00 : f32
    %287 = vector.broadcast %cst_104 : f32 to vector<8x32xf32>
    %288 = arith.maximumf %286, %287 : vector<8x32xf32>
    %c0_105 = arith.constant 0 : index
    %c0_106 = arith.constant 0 : index
    %c0_107 = arith.constant 0 : index
    %289 = vector.load %arg5[%c0_105, %c0_106, %c0_107] : memref<2x32x128xf32, #tpu.memory_space<vmem>>, vector<1x32x128xf32>
    %290 = vector.shape_cast %289 : vector<1x32x128xf32> to vector<32x128xf32>
    %cst_108 = arith.constant dense<0.000000e+00> : vector<8x128xf32>
    %291 = tpu.matmul %144, %290, %cst_108 {dimension_numbers = #tpu.dot_dimension_numbers<[1], [0], [0], [1], [0, 0, 1, 1], [], []>} : vector<8x32xf32>, vector<32x128xf32>, vector<8x128xf32> -> vector<8x128xf32>
    %c1_109 = arith.constant 1 : index
    %c0_110 = arith.constant 0 : index
    %c0_111 = arith.constant 0 : index
    %292 = vector.load %arg5[%c1_109, %c0_110, %c0_111] : memref<2x32x128xf32, #tpu.memory_space<vmem>>, vector<1x32x128xf32>
    %293 = vector.shape_cast %292 : vector<1x32x128xf32> to vector<32x128xf32>
    %cst_112 = arith.constant dense<0.000000e+00> : vector<8x128xf32>
    %294 = tpu.matmul %288, %293, %cst_112 {dimension_numbers = #tpu.dot_dimension_numbers<[1], [0], [0], [1], [0, 0, 1, 1], [], []>} : vector<8x32xf32>, vector<32x128xf32>, vector<8x128xf32> -> vector<8x128xf32>
    %295 = arith.addf %291, %294 : vector<8x128xf32>
    %c0_113 = arith.constant 0 : index
    %c0_114 = arith.constant 0 : index
    %296 = vector.load %arg6[%c0_113, %c0_114] : memref<1x128xf32, #tpu.memory_space<vmem>>, vector<1x128xf32>
    %297 = vector.broadcast %296 : vector<1x128xf32> to vector<8x128xf32>
    %298 = arith.addf %295, %297 : vector<8x128xf32>
    %c0_115 = arith.constant 0 : index
    %c0_116 = arith.constant 0 : index
    %299 = vector.load %arg7[%c0_115, %c0_116] : memref<8x128xf32, #tpu.memory_space<vmem>>, vector<8x128xf32>
    tpu.vector_store %arg7[%c0_115, %c0_116], %298 {strides = array<i32>} : memref<8x128xf32, #tpu.memory_space<vmem>>, vector<8x128xf32>,
    return
  }
  func.func @transform_0(%arg0: i32) -> (i32, i32) {
    %c0_i32 = arith.constant 0 : i32
    %c0_i32_0 = arith.constant 0 : i32
    return %arg0, %c0_i32 : i32, i32
  }
  func.func @transform_1(%arg0: i32) -> (i32, i32, i32) {
    %c0_i32 = arith.constant 0 : i32
    %c0_i32_0 = arith.constant 0 : i32
    %c0_i32_1 = arith.constant 0 : i32
    %c0_i32_2 = arith.constant 0 : i32
    return %c0_i32, %c0_i32_0, %c0_i32_1 : i32, i32, i32
  }
  func.func @transform_2(%arg0: i32) -> (i32, i32, i32) {
    %c0_i32 = arith.constant 0 : i32
    %c0_i32_0 = arith.constant 0 : i32
    %c0_i32_1 = arith.constant 0 : i32
    %c0_i32_2 = arith.constant 0 : i32
    return %c0_i32, %c0_i32_0, %c0_i32_1 : i32, i32, i32
  }
  func.func @transform_3(%arg0: i32) -> (i32, i32, i32) {
    %c0_i32 = arith.constant 0 : i32
    %c0_i32_0 = arith.constant 0 : i32
    %c0_i32_1 = arith.constant 0 : i32
    %c0_i32_2 = arith.constant 0 : i32
    return %c0_i32, %c0_i32_0, %c0_i32_1 : i32, i32, i32
  }
  func.func @transform_4(%arg0: i32) -> (i32, i32, i32) {
    %c0_i32 = arith.constant 0 : i32
    %c0_i32_0 = arith.constant 0 : i32
    %c0_i32_1 = arith.constant 0 : i32
    %c0_i32_2 = arith.constant 0 : i32
    return %c0_i32, %c0_i32_0, %c0_i32_1 : i32, i32, i32
  }
  func.func @transform_5(%arg0: i32) -> (i32, i32) {
    %c0_i32 = arith.constant 0 : i32
    %c0_i32_0 = arith.constant 0 : i32
    %c0_i32_1 = arith.constant 0 : i32
    return %c0_i32, %c0_i32_0 : i32, i32
  }
  func.func @transform_6(%arg0: i32) -> (i32, i32) {
    %c0_i32 = arith.constant 0 : i32
    %c0_i32_0 = arith.constant 0 : i32
    return %arg0, %c0_i32 : i32, i32
  }
}

</mosaic_0001>

<llo_original>
// kernel: tpu_custom_call.1
$region0: #{tpu_custom_call.1}
  #allocation0 [shape = 'u32[]', space=smem, size = 0x4, offset = 0x4, fixed_abs, tag = 'smem constant byte address 0x4 - core index']
  #allocation1 [shape = 'u32[144,128]{1,0:T(1,128)}', space=vmem, size = 0x12000, scoped, tag = 'internal scratch']
  %s0 = inlined_call_operand.vmem [shape: f32[8,24], index: 0, kind: input, shape index: {}]
  %s1 = inlined_call_operand.vmem [shape: f32[2,24,32], index: 1, kind: input, shape index: {}]
  %s2 = inlined_call_operand.hbm [shape: f32[6,32,32], index: 2, kind: input, shape index: {}]
  %s3 = inlined_call_operand.vmem [shape: f32[8,3,32], index: 3, kind: input, shape index: {}]
  %s4 = inlined_call_operand.hbm [shape: f32[2,32,128], index: 4, kind: input, shape index: {}]
  %s5 = inlined_call_operand.vmem [shape: f32[1,128], index: 5, kind: input, shape index: {}]
  %s6 = inlined_call_operand.hbm [shape: f32[8,128], index: 6, kind: output, shape index: {}]
  %s7 = sld [smem:[#allocation0]]
  $region42: #{tpu_custom_call.1} parent=0
    _
  %s9 = ssub.s32 1, %s7
  %s10 = scalar_select 0, %s9, %s7
  $region1: #{tpu_custom_call.1} parent=0
    #allocation2 [shape = 'u8[98304]{0}', space=vmem, size = 0x18000, scoped, tag = 'input window, operand 2, single buffered']
    #allocation3 [shape = 's32[1]{0}', space=sflag, size = 0x4, scoped, tag = 'scoped memory for tpu_custom_call.1']
    #allocation4 [shape = 's32[1]{0}', space=sflag, size = 0x4, scoped, tag = 'scoped memory for tpu_custom_call.1']
    #allocation5 [shape = 'u8[32768]{0}', space=vmem, size = 0x8000, scoped, tag = 'input window, operand 4, single buffered']
    #allocation6 [shape = 's32[1]{0}', space=sflag, size = 0x4, scoped, tag = 'scoped memory for tpu_custom_call.1']
    #allocation7 [shape = 'u8[4096]{0}', space=vmem, size = 0x1000, scoped, tag = 'output window, operand 0, single buffered']
    %11 = vsyncpa [#allocation3], 0
    %12 = vsyncpa [#allocation6], 0
    %13 = vsyncpa [#allocation4], 0
    // Predicated region
    $region2: #{tpu_custom_call.1} parent=1 // pred_check
      _
    $region3: #{tpu_custom_call.1} parent=1 // pred_check_branch
      %15 = sbr.rel (0) target = $region5
    $region4: #{tpu_custom_call.1} parent=1 // pred_region
      _
    $region5: #{tpu_custom_call.1} parent=1 // pred_fallthru
      _
    // Predicated region
    $region6: #{tpu_custom_call.1} parent=1 // pred_check
      _
    $region7: #{tpu_custom_call.1} parent=1 // pred_check_branch
      %17 = sbr.rel (0) target = $region9
    $region8: #{tpu_custom_call.1} parent=1 // pred_region
      _
    $region9: #{tpu_custom_call.1} parent=1 // pred_fallthru
      _
    // Predicated region
    $region10: #{tpu_custom_call.1} parent=1 // pred_check
      _
    $region11: #{tpu_custom_call.1} parent=1 // pred_check_branch
      %19 = sbr.rel (0) target = $region13
    $region12: #{tpu_custom_call.1} parent=1 // pred_region
      %s21 = ssub.s32 3072, 3072
      %22 = vsyncadd [#allocation3], %s21
      %s23 = sshll.u32 [#allocation2], 4
      %s24 = int_to_ptr.vmem [resolvable:$true] %s23
      %29 = dma.hbm_to_vmem [thread:$0]  %s2, 3072, %s24, [#allocation3], 128, 128, 8
    $region13: #{tpu_custom_call.1} parent=1 // pred_fallthru
      _
    // Predicated region
    $region14: #{tpu_custom_call.1} parent=1 // pred_check
      _
    $region15: #{tpu_custom_call.1} parent=1 // pred_check_branch
      %31 = sbr.rel (0) target = $region17
    $region16: #{tpu_custom_call.1} parent=1 // pred_region
      _
    $region17: #{tpu_custom_call.1} parent=1 // pred_fallthru
      _
    // Predicated region
    $region18: #{tpu_custom_call.1} parent=1 // pred_check
      _
    $region19: #{tpu_custom_call.1} parent=1 // pred_check_branch
      %33 = sbr.rel (0) target = $region21
    $region20: #{tpu_custom_call.1} parent=1 // pred_region
      %s35 = ssub.s32 1024, 1024
      %36 = vsyncadd [#allocation6], %s35
      %s37 = sshll.u32 [#allocation5], 4
      %s38 = int_to_ptr.vmem [resolvable:$true] %s37
      %43 = dma.hbm_to_vmem [thread:$0]  %s4, 1024, %s38, [#allocation6], 128, 128, 8
    $region21: #{tpu_custom_call.1} parent=1 // pred_fallthru
      _
    // Predicated region
    $region22: #{tpu_custom_call.1} parent=1 // pred_check
      _
    $region23: #{tpu_custom_call.1} parent=1 // pred_check_branch
      %45 = sbr.rel (0) target = $region25
    $region24: #{tpu_custom_call.1} parent=1 // pred_region
      _
    $region25: #{tpu_custom_call.1} parent=1 // pred_fallthru
      _
    // Predicated region
    $region26: #{tpu_custom_call.1} parent=1 // pred_check
      _
    $region27: #{tpu_custom_call.1} parent=1 // pred_check_branch
      %47 = sbr.rel (0) target = $region29
    $region28: #{tpu_custom_call.1} parent=1 // pred_region
      %48 = dma.done [#allocation3], 3072
    $region29: #{tpu_custom_call.1} parent=1 // pred_fallthru
      _
    // Predicated region
    $region30: #{tpu_custom_call.1} parent=1 // pred_check
      _
    $region31: #{tpu_custom_call.1} parent=1 // pred_check_branch
      %50 = sbr.rel (0) target = $region33
    $region32: #{tpu_custom_call.1} parent=1 // pred_region
      %51 = dma.done [#allocation6], 1024
    $region33: #{tpu_custom_call.1} parent=1 // pred_fallthru
      _
    %v52 = vld [vmem:[%s0] sm:$0xff]
    %v53 = vld [vmem:[%s1] sm:$0xff]
    %v54 = vld [vmem:[%s1 + $0x8] sm:$0xff]
    %v55 = vld [vmem:[%s1 + $0x10] sm:$0xff]
    %v56 = vld [vmem:[%s3] sm:$0x7]
    %v57 = vlaneseq
    %v58 = vshrl.u32 %v57, 7
    %v59 = vsub.s32 0, %v58
    %v60 = vrot.slane %v56, %v59
    %vm61 = vcmask 195584
    %v63 = vsel %vm61, %v52, 0
    %65 = vmatprep.subr.mxu0 0.0
    %66 = vmatpush1.msra.mxu0 0.0
    %67 = vmatprep.subr.mxu0 0.0
    %68 = vmatpush1.msra.mxu0 0.0
    %69 = vmatprep.subr.mxu0 0.0
    %70 = vmatpush1.msra.mxu0 0.0
    %71 = vmatprep.subr.mxu0 0.0
    %72 = vmatpush1.msra.mxu0 0.0
    %73 = vmatprep.subr.mxu0 0.0
    %74 = vmatpush1.msra.mxu0 0.0
    %75 = vmatprep.subr.mxu0 0.0
    %76 = vmatpush1.msra.mxu0 0.0
    %77 = vmatprep.subr.mxu0 0.0
    %78 = vmatpush1.msra.mxu0 0.0
    %79 = vmatprep.subr.mxu0 0.0
    %80 = vmatpush1.msra.mxu0 0.0
    %81 = vmatprep.subr.mxu0 0.0
    %82 = vmatpush1.msra.mxu0 0.0
    %83 = vmatprep.subr.mxu0 0.0
    %84 = vmatpush1.msra.mxu0 0.0
    %85 = vmatprep.subr.mxu0 0.0
    %86 = vmatpush1.msra.mxu0 0.0
    %87 = vmatprep.subr.mxu0 0.0
    %88 = vmatpush1.msra.mxu0 0.0
    %89 = vmatprep.subr.mxu0 0.0
    %90 = vmatpush1.msra.mxu0 0.0
    %91 = vmatprep.subr.mxu0 0.0
    %92 = vmatpush1.msra.mxu0 %v55
    %93 = vmatprep.subr.mxu0 0.0
    %94 = vmatpush1.msra.mxu0 %v54
    %95 = vmatprep.subr.mxu0 0.0
    %96 = vmatpush1.msra.mxu0 %v53
    %97 = vmatprep.subr.mxu0 0.0
    %98 = vmatpush2.msra.mxu0 0.0
    %99 = vmatprep.subr.mxu0 0.0
    %100 = vmatpush2.msra.mxu0 0.0
    %101 = vmatprep.subr.mxu0 0.0
    %102 = vmatpush2.msra.mxu0 0.0
    %103 = vmatprep.subr.mxu0 0.0
    %104 = vmatpush2.msra.mxu0 0.0
    %105 = vmatprep.subr.mxu0 0.0
    %106 = vmatpush2.msra.mxu0 0.0
    %107 = vmatprep.subr.mxu0 0.0
    %108 = vmatpush2.msra.mxu0 0.0
    %109 = vmatprep.subr.mxu0 0.0
    %110 = vmatpush2.msra.mxu0 0.0
    %111 = vmatprep.subr.mxu0 0.0
    %112 = vmatpush2.msra.mxu0 0.0
    %113 = vmatprep.subr.mxu0 0.0
    %114 = vmatpush2.msra.mxu0 0.0
    %115 = vmatprep.subr.mxu0 0.0
    %116 = vmatpush2.msra.mxu0 0.0
    %117 = vmatprep.subr.mxu0 0.0
    %118 = vmatpush2.msra.mxu0 0.0
    %119 = vmatprep.subr.mxu0 0.0
    %120 = vmatpush2.msra.mxu0 0.0
    %121 = vmatprep.subr.mxu0 0.0
    %122 = vmatpush2.msra.mxu0 0.0
    %123 = vmatprep.subr.mxu0 0.0
    %124 = vmatpush2.msra.mxu0 0.0
    %125 = vmatprep.subr.mxu0 0.0
    %126 = vmatpush2.msra.mxu0 0.0
    %127 = vmatprep.subr.mxu0 0.0
    %128 = vmatpush2.msra.mxu0 0.0
    %129 = vmatprep.mubr.f32.mxu0 0.0
    %130 = vmatmul.mubr.f32.gmra.mxu0 %v63
    %v131 = vpop.f32.mrf.mxu0
    %v132 = vadd.f32 %v60, %v131
    %v133 = vpop.f32.mrf.mxu0
    %134 = vdwg.mxu0
    %vm135 = vcmask 261120
    %v136 = vsel %vm135, %v132, 0.0
    %137 = vadd.xlane.f32.xlu0 %v136
    %v138 = vpop.xlane.xlu0 %137
    %v139 = vrcp.pop 32.0
    %v140 = vmul.f32 %v138, %v139
    %v141 = vmul.f32 %v132, %v132
    %v142 = vsel %vm135, %v141, 0.0
    %143 = vadd.xlane.f32.xlu0 %v142
    %v144 = vpop.xlane.xlu0 %143
    %v145 = vmul.f32 %v144, %v139
    %v146 = vmul.f32 %v140, %v140
    %v147 = vsub.f32 %v145, %v146
    %v148 = vmax.f32 %v147, 0.0
    %v149 = vsub.f32 %v132, %v140
    %v150 = vadd.f32 %v148, 1e-05
    %v151 = vrsqrt.pop %v150
    %v152 = vmul.f32 %v149, %v151
    %v153 = vlaneseq
    %v154 = vshrl.u32 %v153, 7
    %v155 = vsub.s32 1, %v154
    %v156 = vrot.slane %v56, %v155
    %v157 = vmul.f32 %v152, %v156
    %v158 = vlaneseq
    %v159 = vshrl.u32 %v158, 7
    %v160 = vsub.s32 2, %v159
    %v161 = vrot.slane %v56, %v160
    %v162 = vadd.f32 %v157, %v161
    %v163 = vmax.f32 %v162, 0.0
    %v164 = vld [vmem:[#allocation2] sm:$0xff]
    %v165 = vld [vmem:[#allocation2 + $0x8] sm:$0xff]
    %v166 = vld [vmem:[#allocation2 + $0x10] sm:$0xff]
    %v167 = vld [vmem:[#allocation2 + $0x18] sm:$0xff]
    %s168 = scalar_lea.vmem %s3, 4
    %v169 = vld [vmem:[%s168] sm:$0x7]
    %v170 = vlaneseq
    %v171 = vshrl.u32 %v170, 7
    %v172 = vsub.s32 0, %v171
    %v173 = vrot.slane %v169, %v172
    %v175 = vsel %vm135, %v163, 0
    %177 = vmatprep.subr.mxu0 0.0
    %178 = vmatpush1.msra.mxu0 0.0
    %179 = vmatprep.subr.mxu0 0.0
    %180 = vmatpush1.msra.mxu0 0.0
    %181 = vmatprep.subr.mxu0 0.0
    %182 = vmatpush1.msra.mxu0 0.0
    %183 = vmatprep.subr.mxu0 0.0
    %184 = vmatpush1.msra.mxu0 0.0
    %185 = vmatprep.subr.mxu0 0.0
    %186 = vmatpush1.msra.mxu0 0.0
    %187 = vmatprep.subr.mxu0 0.0
    %188 = vmatpush1.msra.mxu0 0.0
    %189 = vmatprep.subr.mxu0 0.0
    %190 = vmatpush1.msra.mxu0 0.0
    %191 = vmatprep.subr.mxu0 0.0
    %192 = vmatpush1.msra.mxu0 0.0
    %193 = vmatprep.subr.mxu0 0.0
    %194 = vmatpush1.msra.mxu0 0.0
    %195 = vmatprep.subr.mxu0 0.0
    %196 = vmatpush1.msra.mxu0 0.0
    %197 = vmatprep.subr.mxu0 0.0
    %198 = vmatpush1.msra.mxu0 0.0
    %199 = vmatprep.subr.mxu0 0.0
    %200 = vmatpush1.msra.mxu0 0.0
    %201 = vmatprep.subr.mxu0 0.0
    %202 = vmatpush1.msra.mxu0 %v167
    %203 = vmatprep.subr.mxu0 0.0
    %204 = vmatpush1.msra.mxu0 %v166
    %205 = vmatprep.subr.mxu0 0.0
    %206 = vmatpush1.msra.mxu0 %v165
    %207 = vmatprep.subr.mxu0 0.0
    %208 = vmatpush1.msra.mxu0 %v164
    %209 = vmatprep.subr.mxu0 0.0
    %210 = vmatpush2.msra.mxu0 0.0
    %211 = vmatprep.subr.mxu0 0.0
    %212 = vmatpush2.msra.mxu0 0.0
    %213 = vmatprep.subr.mxu0 0.0
    %214 = vmatpush2.msra.mxu0 0.0
    %215 = vmatprep.subr.mxu0 0.0
    %216 = vmatpush2.msra.mxu0 0.0
    %217 = vmatprep.subr.mxu0 0.0
    %218 = vmatpush2.msra.mxu0 0.0
    %219 = vmatprep.subr.mxu0 0.0
    %220 = vmatpush2.msra.mxu0 0.0
    %221 = vmatprep.subr.mxu0 0.0
    %222 = vmatpush2.msra.mxu0 0.0
    %223 = vmatprep.subr.mxu0 0.0
    %224 = vmatpush2.msra.mxu0 0.0
    %225 = vmatprep.subr.mxu0 0.0
    %226 = vmatpush2.msra.mxu0 0.0
    %227 = vmatprep.subr.mxu0 0.0
    %228 = vmatpush2.msra.mxu0 0.0
    %229 = vmatprep.subr.mxu0 0.0
    %230 = vmatpush2.msra.mxu0 0.0
    %231 = vmatprep.subr.mxu0 0.0
    %232 = vmatpush2.msra.mxu0 0.0
    %233 = vmatprep.subr.mxu0 0.0
    %234 = vmatpush2.msra.mxu0 0.0
    %235 = vmatprep.subr.mxu0 0.0
    %236 = vmatpush2.msra.mxu0 0.0
    %237 = vmatprep.subr.mxu0 0.0
    %238 = vmatpush2.msra.mxu0 0.0
    %239 = vmatprep.subr.mxu0 0.0
    %240 = vmatpush2.msra.mxu0 0.0
    %241 = vmatprep.mubr.f32.mxu0 0.0
    %242 = vmatmul.mubr.f32.gmra.mxu0 %v175
    %v243 = vpop.f32.mrf.mxu0
    %v244 = vadd.f32 %v173, %v243
    %v245 = vpop.f32.mrf.mxu0
    %246 = vdwg.mxu0
    %v247 = vsel %vm135, %v244, 0.0
    %248 = vadd.xlane.f32.xlu0 %v247
    %v249 = vpop.xlane.xlu0 %248
    %v250 = vmul.f32 %v249, %v139
    %v251 = vmul.f32 %v244, %v244
    %v252 = vsel %vm135, %v251, 0.0
    %253 = vadd.xlane.f32.xlu0 %v252
    %v254 = vpop.xlane.xlu0 %253
    %v255 = vmul.f32 %v254, %v139
    %v256 = vmul.f32 %v250, %v250
    %v257 = vsub.f32 %v255, %v256
    %v258 = vmax.f32 %v257, 0.0
    %v259 = vsub.f32 %v244, %v250
    %v260 = vadd.f32 %v258, 1e-05
    %v261 = vrsqrt.pop %v260
    %v262 = vmul.f32 %v259, %v261
    %v263 = vlaneseq
    %v264 = vshrl.u32 %v263, 7
    %v265 = vsub.s32 1, %v264
    %v266 = vrot.slane %v169, %v265
    %v267 = vmul.f32 %v262, %v266
    %v268 = vlaneseq
    %v269 = vshrl.u32 %v268, 7
    %v270 = vsub.s32 2, %v269
    %v271 = vrot.slane %v169, %v270
    %v272 = vadd.f32 %v267, %v271
    %v273 = vmax.f32 %v272, 0.0
    %s274 = scalar_lea.vmem [#allocation2], 32
    %v275 = vld [vmem:[%s274] sm:$0xff]
    %v276 = vld [vmem:[%s274 + $0x8] sm:$0xff]
    %v277 = vld [vmem:[%s274 + $0x10] sm:$0xff]
    %v278 = vld [vmem:[%s274 + $0x18] sm:$0xff]
    %s279 = scalar_lea.vmem %s3, 8
    %v280 = vld [vmem:[%s279] sm:$0x7]
    %v281 = vlaneseq
    %v282 = vshrl.u32 %v281, 7
    %v283 = vsub.s32 0, %v282
    %v284 = vrot.slane %v280, %v283
    %v286 = vsel %vm135, %v273, 0
    %288 = vmatprep.subr.mxu0 0.0
    %289 = vmatpush1.msra.mxu0 0.0
    %290 = vmatprep.subr.mxu0 0.0
    %291 = vmatpush1.msra.mxu0 0.0
    %292 = vmatprep.subr.mxu0 0.0
    %293 = vmatpush1.msra.mxu0 0.0
    %294 = vmatprep.subr.mxu0 0.0
    %295 = vmatpush1.msra.mxu0 0.0
    %296 = vmatprep.subr.mxu0 0.0
    %297 = vmatpush1.msra.mxu0 0.0
    %298 = vmatprep.subr.mxu0 0.0
    %299 = vmatpush1.msra.mxu0 0.0
    %300 = vmatprep.subr.mxu0 0.0
    %301 = vmatpush1.msra.mxu0 0.0
    %302 = vmatprep.subr.mxu0 0.0
    %303 = vmatpush1.msra.mxu0 0.0
    %304 = vmatprep.subr.mxu0 0.0
    %305 = vmatpush1.msra.mxu0 0.0
    %306 = vmatprep.subr.mxu0 0.0
    %307 = vmatpush1.msra.mxu0 0.0
    %308 = vmatprep.subr.mxu0 0.0
    %309 = vmatpush1.msra.mxu0 0.0
    %310 = vmatprep.subr.mxu0 0.0
    %311 = vmatpush1.msra.mxu0 0.0
    %312 = vmatprep.subr.mxu0 0.0
    %313 = vmatpush1.msra.mxu0 %v278
    %314 = vmatprep.subr.mxu0 0.0
    %315 = vmatpush1.msra.mxu0 %v277
    %316 = vmatprep.subr.mxu0 0.0
    %317 = vmatpush1.msra.mxu0 %v276
    %318 = vmatprep.subr.mxu0 0.0
    %319 = vmatpush1.msra.mxu0 %v275
    %320 = vmatprep.subr.mxu0 0.0
    %321 = vmatpush2.msra.mxu0 0.0
    %322 = vmatprep.subr.mxu0 0.0
    %323 = vmatpush2.msra.mxu0 0.0
    %324 = vmatprep.subr.mxu0 0.0
    %325 = vmatpush2.msra.mxu0 0.0
    %326 = vmatprep.subr.mxu0 0.0
    %327 = vmatpush2.msra.mxu0 0.0
    %328 = vmatprep.subr.mxu0 0.0
    %329 = vmatpush2.msra.mxu0 0.0
    %330 = vmatprep.subr.mxu0 0.0
    %331 = vmatpush2.msra.mxu0 0.0
    %332 = vmatprep.subr.mxu0 0.0
    %333 = vmatpush2.msra.mxu0 0.0
    %334 = vmatprep.subr.mxu0 0.0
    %335 = vmatpush2.msra.mxu0 0.0
    %336 = vmatprep.subr.mxu0 0.0
    %337 = vmatpush2.msra.mxu0 0.0
    %338 = vmatprep.subr.mxu0 0.0
    %339 = vmatpush2.msra.mxu0 0.0
    %340 = vmatprep.subr.mxu0 0.0
    %341 = vmatpush2.msra.mxu0 0.0
    %342 = vmatprep.subr.mxu0 0.0
    %343 = vmatpush2.msra.mxu0 0.0
    %344 = vmatprep.subr.mxu0 0.0
    %345 = vmatpush2.msra.mxu0 0.0
    %346 = vmatprep.subr.mxu0 0.0
    %347 = vmatpush2.msra.mxu0 0.0
    %348 = vmatprep.subr.mxu0 0.0
    %349 = vmatpush2.msra.mxu0 0.0
    %350 = vmatprep.subr.mxu0 0.0
    %351 = vmatpush2.msra.mxu0 0.0
    %352 = vmatprep.mubr.f32.mxu0 0.0
    %353 = vmatmul.mubr.f32.gmra.mxu0 %v286
    %v354 = vpop.f32.mrf.mxu0
    %v355 = vadd.f32 %v284, %v354
    %v356 = vpop.f32.mrf.mxu0
    %357 = vdwg.mxu0
    %v358 = vsel %vm135, %v355, 0.0
    %359 = vadd.xlane.f32.xlu0 %v358
    %v360 = vpop.xlane.xlu0 %359
    %v361 = vmul.f32 %v360, %v139
    %v362 = vmul.f32 %v355, %v355
    %v363 = vsel %vm135, %v362, 0.0
    %364 = vadd.xlane.f32.xlu0 %v363
    %v365 = vpop.xlane.xlu0 %364
    %v366 = vmul.f32 %v365, %v139
    %v367 = vmul.f32 %v361, %v361
    %v368 = vsub.f32 %v366, %v367
    %v369 = vmax.f32 %v368, 0.0
    %v370 = vsub.f32 %v355, %v361
    %v371 = vadd.f32 %v369, 1e-05
    %v372 = vrsqrt.pop %v371
    %v373 = vmul.f32 %v370, %v372
    %v374 = vlaneseq
    %v375 = vshrl.u32 %v374, 7
    %v376 = vsub.s32 1, %v375
    %v377 = vrot.slane %v280, %v376
    %v378 = vmul.f32 %v373, %v377
    %v379 = vlaneseq
    %v380 = vshrl.u32 %v379, 7
    %v381 = vsub.s32 2, %v380
    %v382 = vrot.slane %v280, %v381
    %v383 = vadd.f32 %v378, %v382
    %v384 = vmax.f32 %v383, 0.0
    %s385 = scalar_lea.vmem [#allocation2], 64
    %v386 = vld [vmem:[%s385] sm:$0xff]
    %v387 = vld [vmem:[%s385 + $0x8] sm:$0xff]
    %v388 = vld [vmem:[%s385 + $0x10] sm:$0xff]
    %v389 = vld [vmem:[%s385 + $0x18] sm:$0xff]
    %s390 = scalar_lea.vmem %s3, 12
    %v391 = vld [vmem:[%s390] sm:$0x7]
    %v392 = vlaneseq
    %v393 = vshrl.u32 %v392, 7
    %v394 = vsub.s32 0, %v393
    %v395 = vrot.slane %v391, %v394
    %v397 = vsel %vm135, %v384, 0
    %399 = vmatprep.subr.mxu0 0.0
    %400 = vmatpush1.msra.mxu0 0.0
    %401 = vmatprep.subr.mxu0 0.0
    %402 = vmatpush1.msra.mxu0 0.0
    %403 = vmatprep.subr.mxu0 0.0
    %404 = vmatpush1.msra.mxu0 0.0
    %405 = vmatprep.subr.mxu0 0.0
    %406 = vmatpush1.msra.mxu0 0.0
    %407 = vmatprep.subr.mxu0 0.0
    %408 = vmatpush1.msra.mxu0 0.0
    %409 = vmatprep.subr.mxu0 0.0
    %410 = vmatpush1.msra.mxu0 0.0
    %411 = vmatprep.subr.mxu0 0.0
    %412 = vmatpush1.msra.mxu0 0.0
    %413 = vmatprep.subr.mxu0 0.0
    %414 = vmatpush1.msra.mxu0 0.0
    %415 = vmatprep.subr.mxu0 0.0
    %416 = vmatpush1.msra.mxu0 0.0
    %417 = vmatprep.subr.mxu0 0.0
    %418 = vmatpush1.msra.mxu0 0.0
    %419 = vmatprep.subr.mxu0 0.0
    %420 = vmatpush1.msra.mxu0 0.0
    %421 = vmatprep.subr.mxu0 0.0
    %422 = vmatpush1.msra.mxu0 0.0
    %423 = vmatprep.subr.mxu0 0.0
    %424 = vmatpush1.msra.mxu0 %v389
    %425 = vmatprep.subr.mxu0 0.0
    %426 = vmatpush1.msra.mxu0 %v388
    %427 = vmatprep.subr.mxu0 0.0
    %428 = vmatpush1.msra.mxu0 %v387
    %429 = vmatprep.subr.mxu0 0.0
    %430 = vmatpush1.msra.mxu0 %v386
    %431 = vmatprep.subr.mxu0 0.0
    %432 = vmatpush2.msra.mxu0 0.0
    %433 = vmatprep.subr.mxu0 0.0
    %434 = vmatpush2.msra.mxu0 0.0
    %435 = vmatprep.subr.mxu0 0.0
    %436 = vmatpush2.msra.mxu0 0.0
    %437 = vmatprep.subr.mxu0 0.0
    %438 = vmatpush2.msra.mxu0 0.0
    %439 = vmatprep.subr.mxu0 0.0
    %440 = vmatpush2.msra.mxu0 0.0
    %441 = vmatprep.subr.mxu0 0.0
    %442 = vmatpush2.msra.mxu0 0.0
    %443 = vmatprep.subr.mxu0 0.0
    %444 = vmatpush2.msra.mxu0 0.0
    %445 = vmatprep.subr.mxu0 0.0
    %446 = vmatpush2.msra.mxu0 0.0
    %447 = vmatprep.subr.mxu0 0.0
    %448 = vmatpush2.msra.mxu0 0.0
    %449 = vmatprep.subr.mxu0 0.0
    %450 = vmatpush2.msra.mxu0 0.0
    %451 = vmatprep.subr.mxu0 0.0
    %452 = vmatpush2.msra.mxu0 0.0
    %453 = vmatprep.subr.mxu0 0.0
    %454 = vmatpush2.msra.mxu0 0.0
    %455 = vmatprep.subr.mxu0 0.0
    %456 = vmatpush2.msra.mxu0 0.0
    %457 = vmatprep.subr.mxu0 0.0
    %458 = vmatpush2.msra.mxu0 0.0
    %459 = vmatprep.subr.mxu0 0.0
    %460 = vmatpush2.msra.mxu0 0.0
    %461 = vmatprep.subr.mxu0 0.0
    %462 = vmatpush2.msra.mxu0 0.0
    %463 = vmatprep.mubr.f32.mxu0 0.0
    %464 = vmatmul.mubr.f32.gmra.mxu0 %v397
    %v465 = vpop.f32.mrf.mxu0
    %v466 = vadd.f32 %v395, %v465
    %v467 = vpop.f32.mrf.mxu0
    %468 = vdwg.mxu0
    %v469 = vsel %vm135, %v466, 0.0
    %470 = vadd.xlane.f32.xlu0 %v469
    %v471 = vpop.xlane.xlu0 %470
    %v472 = vmul.f32 %v471, %v139
    %v473 = vmul.f32 %v466, %v466
    %v474 = vsel %vm135, %v473, 0.0
    %475 = vadd.xlane.f32.xlu0 %v474
    %v476 = vpop.xlane.xlu0 %475
    %v477 = vmul.f32 %v476, %v139
    %v478 = vmul.f32 %v472, %v472
    %v479 = vsub.f32 %v477, %v478
    %v480 = vmax.f32 %v479, 0.0
    %v481 = vsub.f32 %v466, %v472
    %v482 = vadd.f32 %v480, 1e-05
    %v483 = vrsqrt.pop %v482
    %v484 = vmul.f32 %v481, %v483
    %v485 = vlaneseq
    %v486 = vshrl.u32 %v485, 7
    %v487 = vsub.s32 1, %v486
    %v488 = vrot.slane %v391, %v487
    %v489 = vmul.f32 %v484, %v488
    %v490 = vlaneseq
    %v491 = vshrl.u32 %v490, 7
    %v492 = vsub.s32 2, %v491
    %v493 = vrot.slane %v391, %v492
    %v494 = vadd.f32 %v489, %v493
    %v495 = vmax.f32 %v494, 0.0
    %s496 = scalar_lea.vmem %s1, 24
    %v497 = vld [vmem:[%s496] sm:$0xff]
    %v498 = vld [vmem:[%s496 + $0x8] sm:$0xff]
    %v499 = vld [vmem:[%s496 + $0x10] sm:$0xff]
    %s500 = scalar_lea.vmem %s3, 16
    %v501 = vld [vmem:[%s500] sm:$0x7]
    %v502 = vlaneseq
    %v503 = vshrl.u32 %v502, 7
    %v504 = vsub.s32 0, %v503
    %v505 = vrot.slane %v501, %v504
    %506 = vmatprep.subr.mxu0 0.0
    %507 = vmatpush1.msra.mxu0 0.0
    %508 = vmatprep.subr.mxu0 0.0
    %509 = vmatpush1.msra.mxu0 0.0
    %510 = vmatprep.subr.mxu0 0.0
    %511 = vmatpush1.msra.mxu0 0.0
    %512 = vmatprep.subr.mxu0 0.0
    %513 = vmatpush1.msra.mxu0 0.0
    %514 = vmatprep.subr.mxu0 0.0
    %515 = vmatpush1.msra.mxu0 0.0
    %516 = vmatprep.subr.mxu0 0.0
    %517 = vmatpush1.msra.mxu0 0.0
    %518 = vmatprep.subr.mxu0 0.0
    %519 = vmatpush1.msra.mxu0 0.0
    %520 = vmatprep.subr.mxu0 0.0
    %521 = vmatpush1.msra.mxu0 0.0
    %522 = vmatprep.subr.mxu0 0.0
    %523 = vmatpush1.msra.mxu0 0.0
    %524 = vmatprep.subr.mxu0 0.0
    %525 = vmatpush1.msra.mxu0 0.0
    %526 = vmatprep.subr.mxu0 0.0
    %527 = vmatpush1.msra.mxu0 0.0
    %528 = vmatprep.subr.mxu0 0.0
    %529 = vmatpush1.msra.mxu0 0.0
    %530 = vmatprep.subr.mxu0 0.0
    %531 = vmatpush1.msra.mxu0 0.0
    %532 = vmatprep.subr.mxu0 0.0
    %533 = vmatpush1.msra.mxu0 %v499
    %534 = vmatprep.subr.mxu0 0.0
    %535 = vmatpush1.msra.mxu0 %v498
    %536 = vmatprep.subr.mxu0 0.0
    %537 = vmatpush1.msra.mxu0 %v497
    %538 = vmatprep.subr.mxu0 0.0
    %539 = vmatpush2.msra.mxu0 0.0
    %540 = vmatprep.subr.mxu0 0.0
    %541 = vmatpush2.msra.mxu0 0.0
    %542 = vmatprep.subr.mxu0 0.0
    %543 = vmatpush2.msra.mxu0 0.0
    %544 = vmatprep.subr.mxu0 0.0
    %545 = vmatpush2.msra.mxu0 0.0
    %546 = vmatprep.subr.mxu0 0.0
    %547 = vmatpush2.msra.mxu0 0.0
    %548 = vmatprep.subr.mxu0 0.0
    %549 = vmatpush2.msra.mxu0 0.0
    %550 = vmatprep.subr.mxu0 0.0
    %551 = vmatpush2.msra.mxu0 0.0
    %552 = vmatprep.subr.mxu0 0.0
    %553 = vmatpush2.msra.mxu0 0.0
    %554 = vmatprep.subr.mxu0 0.0
    %555 = vmatpush2.msra.mxu0 0.0
    %556 = vmatprep.subr.mxu0 0.0
    %557 = vmatpush2.msra.mxu0 0.0
    %558 = vmatprep.subr.mxu0 0.0
    %559 = vmatpush2.msra.mxu0 0.0
    %560 = vmatprep.subr.mxu0 0.0
    %561 = vmatpush2.msra.mxu0 0.0
    %562 = vmatprep.subr.mxu0 0.0
    %563 = vmatpush2.msra.mxu0 0.0
    %564 = vmatprep.subr.mxu0 0.0
    %565 = vmatpush2.msra.mxu0 0.0
    %566 = vmatprep.subr.mxu0 0.0
    %567 = vmatpush2.msra.mxu0 0.0
    %568 = vmatprep.subr.mxu0 0.0
    %569 = vmatpush2.msra.mxu0 0.0
    %570 = vmatprep.mubr.f32.mxu0 0.0
    %571 = vmatmul.mubr.f32.gmra.mxu0 %v63
    %v572 = vpop.f32.mrf.mxu0
    %v573 = vadd.f32 %v505, %v572
    %v574 = vpop.f32.mrf.mxu0
    %575 = vdwg.mxu0
    %v576 = vsel %vm135, %v573, 0.0
    %577 = vadd.xlane.f32.xlu0 %v576
    %v578 = vpop.xlane.xlu0 %577
    %v579 = vmul.f32 %v578, %v139
    %v580 = vmul.f32 %v573, %v573
    %v581 = vsel %vm135, %v580, 0.0
    %582 = vadd.xlane.f32.xlu0 %v581
    %v583 = vpop.xlane.xlu0 %582
    %v584 = vmul.f32 %v583, %v139
    %v585 = vmul.f32 %v579, %v579
    %v586 = vsub.f32 %v584, %v585
    %v587 = vmax.f32 %v586, 0.0
    %v588 = vsub.f32 %v573, %v579
    %v589 = vadd.f32 %v587, 1e-05
    %v590 = vrsqrt.pop %v589
    %v591 = vmul.f32 %v588, %v590
    %v592 = vlaneseq
    %v593 = vshrl.u32 %v592, 7
    %v594 = vsub.s32 1, %v593
    %v595 = vrot.slane %v501, %v594
    %v596 = vmul.f32 %v591, %v595
    %v597 = vlaneseq
    %v598 = vshrl.u32 %v597, 7
    %v599 = vsub.s32 2, %v598
    %v600 = vrot.slane %v501, %v599
    %v601 = vadd.f32 %v596, %v600
    %v602 = vmax.f32 %v601, 0.0
    %s603 = scalar_lea.vmem [#allocation2], 96
    %v604 = vld [vmem:[%s603] sm:$0xff]
    %v605 = vld [vmem:[%s603 + $0x8] sm:$0xff]
    %v606 = vld [vmem:[%s603 + $0x10] sm:$0xff]
    %v607 = vld [vmem:[%s603 + $0x18] sm:$0xff]
    %s608 = scalar_lea.vmem %s3, 20
    %v609 = vld [vmem:[%s608] sm:$0x7]
    %v610 = vlaneseq
    %v611 = vshrl.u32 %v610, 7
    %v612 = vsub.s32 0, %v611
    %v613 = vrot.slane %v609, %v612
    %v615 = vsel %vm135, %v602, 0
    %617 = vmatprep.subr.mxu0 0.0
    %618 = vmatpush1.msra.mxu0 0.0
    %619 = vmatprep.subr.mxu0 0.0
    %620 = vmatpush1.msra.mxu0 0.0
    %621 = vmatprep.subr.mxu0 0.0
    %622 = vmatpush1.msra.mxu0 0.0
    %623 = vmatprep.subr.mxu0 0.0
    %624 = vmatpush1.msra.mxu0 0.0
    %625 = vmatprep.subr.mxu0 0.0
    %626 = vmatpush1.msra.mxu0 0.0
    %627 = vmatprep.subr.mxu0 0.0
    %628 = vmatpush1.msra.mxu0 0.0
    %629 = vmatprep.subr.mxu0 0.0
    %630 = vmatpush1.msra.mxu0 0.0
    %631 = vmatprep.subr.mxu0 0.0
    %632 = vmatpush1.msra.mxu0 0.0
    %633 = vmatprep.subr.mxu0 0.0
    %634 = vmatpush1.msra.mxu0 0.0
    %635 = vmatprep.subr.mxu0 0.0
    %636 = vmatpush1.msra.mxu0 0.0
    %637 = vmatprep.subr.mxu0 0.0
    %638 = vmatpush1.msra.mxu0 0.0
    %639 = vmatprep.subr.mxu0 0.0
    %640 = vmatpush1.msra.mxu0 0.0
    %641 = vmatprep.subr.mxu0 0.0
    %642 = vmatpush1.msra.mxu0 %v607
    %643 = vmatprep.subr.mxu0 0.0
    %644 = vmatpush1.msra.mxu0 %v606
    %645 = vmatprep.subr.mxu0 0.0
    %646 = vmatpush1.msra.mxu0 %v605
    %647 = vmatprep.subr.mxu0 0.0
    %648 = vmatpush1.msra.mxu0 %v604
    %649 = vmatprep.subr.mxu0 0.0
    %650 = vmatpush2.msra.mxu0 0.0
    %651 = vmatprep.subr.mxu0 0.0
    %652 = vmatpush2.msra.mxu0 0.0
    %653 = vmatprep.subr.mxu0 0.0
    %654 = vmatpush2.msra.mxu0 0.0
    %655 = vmatprep.subr.mxu0 0.0
    %656 = vmatpush2.msra.mxu0 0.0
    %657 = vmatprep.subr.mxu0 0.0
    %658 = vmatpush2.msra.mxu0 0.0
    %659 = vmatprep.subr.mxu0 0.0
    %660 = vmatpush2.msra.mxu0 0.0
    %661 = vmatprep.subr.mxu0 0.0
    %662 = vmatpush2.msra.mxu0 0.0
    %663 = vmatprep.subr.mxu0 0.0
    %664 = vmatpush2.msra.mxu0 0.0
    %665 = vmatprep.subr.mxu0 0.0
    %666 = vmatpush2.msra.mxu0 0.0
    %667 = vmatprep.subr.mxu0 0.0
    %668 = vmatpush2.msra.mxu0 0.0
    %669 = vmatprep.subr.mxu0 0.0
    %670 = vmatpush2.msra.mxu0 0.0
    %671 = vmatprep.subr.mxu0 0.0
    %672 = vmatpush2.msra.mxu0 0.0
    %673 = vmatprep.subr.mxu0 0.0
    %674 = vmatpush2.msra.mxu0 0.0
    %675 = vmatprep.subr.mxu0 0.0
    %676 = vmatpush2.msra.mxu0 0.0
    %677 = vmatprep.subr.mxu0 0.0
    %678 = vmatpush2.msra.mxu0 0.0
    %679 = vmatprep.subr.mxu0 0.0
    %680 = vmatpush2.msra.mxu0 0.0
    %681 = vmatprep.mubr.f32.mxu0 0.0
    %682 = vmatmul.mubr.f32.gmra.mxu0 %v615
    %v683 = vpop.f32.mrf.mxu0
    %v684 = vadd.f32 %v613, %v683
    %v685 = vpop.f32.mrf.mxu0
    %686 = vdwg.mxu0
    %v687 = vsel %vm135, %v684, 0.0
    %688 = vadd.xlane.f32.xlu0 %v687
    %v689 = vpop.xlane.xlu0 %688
    %v690 = vmul.f32 %v689, %v139
    %v691 = vmul.f32 %v684, %v684
    %v692 = vsel %vm135, %v691, 0.0
    %693 = vadd.xlane.f32.xlu0 %v692
    %v694 = vpop.xlane.xlu0 %693
    %v695 = vmul.f32 %v694, %v139
    %v696 = vmul.f32 %v690, %v690
    %v697 = vsub.f32 %v695, %v696
    %v698 = vmax.f32 %v697, 0.0
    %v699 = vsub.f32 %v684, %v690
    %v700 = vadd.f32 %v698, 1e-05
    %v701 = vrsqrt.pop %v700
    %v702 = vmul.f32 %v699, %v701
    %v703 = vlaneseq
    %v704 = vshrl.u32 %v703, 7
    %v705 = vsub.s32 1, %v704
    %v706 = vrot.slane %v609, %v705
    %v707 = vmul.f32 %v702, %v706
    %v708 = vlaneseq
    %v709 = vshrl.u32 %v708, 7
    %v710 = vsub.s32 2, %v709
    %v711 = vrot.slane %v609, %v710
    %v712 = vadd.f32 %v707, %v711
    %v713 = vmax.f32 %v712, 0.0
    %s714 = scalar_lea.vmem [#allocation2], 128
    %v715 = vld [vmem:[%s714] sm:$0xff]
    %v716 = vld [vmem:[%s714 + $0x8] sm:$0xff]
    %v717 = vld [vmem:[%s714 + $0x10] sm:$0xff]
    %v718 = vld [vmem:[%s714 + $0x18] sm:$0xff]
    %s719 = scalar_lea.vmem %s3, 24
    %v720 = vld [vmem:[%s719] sm:$0x7]
    %v721 = vlaneseq
    %v722 = vshrl.u32 %v721, 7
    %v723 = vsub.s32 0, %v722
    %v724 = vrot.slane %v720, %v723
    %v726 = vsel %vm135, %v713, 0
    %728 = vmatprep.subr.mxu0 0.0
    %729 = vmatpush1.msra.mxu0 0.0
    %730 = vmatprep.subr.mxu0 0.0
    %731 = vmatpush1.msra.mxu0 0.0
    %732 = vmatprep.subr.mxu0 0.0
    %733 = vmatpush1.msra.mxu0 0.0
    %734 = vmatprep.subr.mxu0 0.0
    %735 = vmatpush1.msra.mxu0 0.0
    %736 = vmatprep.subr.mxu0 0.0
    %737 = vmatpush1.msra.mxu0 0.0
    %738 = vmatprep.subr.mxu0 0.0
    %739 = vmatpush1.msra.mxu0 0.0
    %740 = vmatprep.subr.mxu0 0.0
    %741 = vmatpush1.msra.mxu0 0.0
    %742 = vmatprep.subr.mxu0 0.0
    %743 = vmatpush1.msra.mxu0 0.0
    %744 = vmatprep.subr.mxu0 0.0
    %745 = vmatpush1.msra.mxu0 0.0
    %746 = vmatprep.subr.mxu0 0.0
    %747 = vmatpush1.msra.mxu0 0.0
    %748 = vmatprep.subr.mxu0 0.0
    %749 = vmatpush1.msra.mxu0 0.0
    %750 = vmatprep.subr.mxu0 0.0
    %751 = vmatpush1.msra.mxu0 0.0
    %752 = vmatprep.subr.mxu0 0.0
    %753 = vmatpush1.msra.mxu0 %v718
    %754 = vmatprep.subr.mxu0 0.0
    %755 = vmatpush1.msra.mxu0 %v717
    %756 = vmatprep.subr.mxu0 0.0
    %757 = vmatpush1.msra.mxu0 %v716
    %758 = vmatprep.subr.mxu0 0.0
    %759 = vmatpush1.msra.mxu0 %v715
    %760 = vmatprep.subr.mxu0 0.0
    %761 = vmatpush2.msra.mxu0 0.0
    %762 = vmatprep.subr.mxu0 0.0
    %763 = vmatpush2.msra.mxu0 0.0
    %764 = vmatprep.subr.mxu0 0.0
    %765 = vmatpush2.msra.mxu0 0.0
    %766 = vmatprep.subr.mxu0 0.0
    %767 = vmatpush2.msra.mxu0 0.0
    %768 = vmatprep.subr.mxu0 0.0
    %769 = vmatpush2.msra.mxu0 0.0
    %770 = vmatprep.subr.mxu0 0.0
    %771 = vmatpush2.msra.mxu0 0.0
    %772 = vmatprep.subr.mxu0 0.0
    %773 = vmatpush2.msra.mxu0 0.0
    %774 = vmatprep.subr.mxu0 0.0
    %775 = vmatpush2.msra.mxu0 0.0
    %776 = vmatprep.subr.mxu0 0.0
    %777 = vmatpush2.msra.mxu0 0.0
    %778 = vmatprep.subr.mxu0 0.0
    %779 = vmatpush2.msra.mxu0 0.0
    %780 = vmatprep.subr.mxu0 0.0
    %781 = vmatpush2.msra.mxu0 0.0
    %782 = vmatprep.subr.mxu0 0.0
    %783 = vmatpush2.msra.mxu0 0.0
    %784 = vmatprep.subr.mxu0 0.0
    %785 = vmatpush2.msra.mxu0 0.0
    %786 = vmatprep.subr.mxu0 0.0
    %787 = vmatpush2.msra.mxu0 0.0
    %788 = vmatprep.subr.mxu0 0.0
    %789 = vmatpush2.msra.mxu0 0.0
    %790 = vmatprep.subr.mxu0 0.0
    %791 = vmatpush2.msra.mxu0 0.0
    %792 = vmatprep.mubr.f32.mxu0 0.0
    %793 = vmatmul.mubr.f32.gmra.mxu0 %v726
    %v794 = vpop.f32.mrf.mxu0
    %v795 = vadd.f32 %v724, %v794
    %v796 = vpop.f32.mrf.mxu0
    %797 = vdwg.mxu0
    %v798 = vsel %vm135, %v795, 0.0
    %799 = vadd.xlane.f32.xlu0 %v798
    %v800 = vpop.xlane.xlu0 %799
    %v801 = vmul.f32 %v800, %v139
    %v802 = vmul.f32 %v795, %v795
    %v803 = vsel %vm135, %v802, 0.0
    %804 = vadd.xlane.f32.xlu0 %v803
    %v805 = vpop.xlane.xlu0 %804
    %v806 = vmul.f32 %v805, %v139
    %v807 = vmul.f32 %v801, %v801
    %v808 = vsub.f32 %v806, %v807
    %v809 = vmax.f32 %v808, 0.0
    %v810 = vsub.f32 %v795, %v801
    %v811 = vadd.f32 %v809, 1e-05
    %v812 = vrsqrt.pop %v811
    %v813 = vmul.f32 %v810, %v812
    %v814 = vlaneseq
    %v815 = vshrl.u32 %v814, 7
    %v816 = vsub.s32 1, %v815
    %v817 = vrot.slane %v720, %v816
    %v818 = vmul.f32 %v813, %v817
    %v819 = vlaneseq
    %v820 = vshrl.u32 %v819, 7
    %v821 = vsub.s32 2, %v820
    %v822 = vrot.slane %v720, %v821
    %v823 = vadd.f32 %v818, %v822
    %v824 = vmax.f32 %v823, 0.0
    %s825 = scalar_lea.vmem [#allocation2], 160
    %v826 = vld [vmem:[%s825] sm:$0xff]
    %v827 = vld [vmem:[%s825 + $0x8] sm:$0xff]
    %v828 = vld [vmem:[%s825 + $0x10] sm:$0xff]
    %v829 = vld [vmem:[%s825 + $0x18] sm:$0xff]
    %s830 = scalar_lea.vmem %s3, 28
    %v831 = vld [vmem:[%s830] sm:$0x7]
    %v832 = vlaneseq
    %v833 = vshrl.u32 %v832, 7
    %v834 = vsub.s32 0, %v833
    %v835 = vrot.slane %v831, %v834
    %v837 = vsel %vm135, %v824, 0
    %839 = vmatprep.subr.mxu0 0.0
    %840 = vmatpush1.msra.mxu0 0.0
    %841 = vmatprep.subr.mxu0 0.0
    %842 = vmatpush1.msra.mxu0 0.0
    %843 = vmatprep.subr.mxu0 0.0
    %844 = vmatpush1.msra.mxu0 0.0
    %845 = vmatprep.subr.mxu0 0.0
    %846 = vmatpush1.msra.mxu0 0.0
    %847 = vmatprep.subr.mxu0 0.0
    %848 = vmatpush1.msra.mxu0 0.0
    %849 = vmatprep.subr.mxu0 0.0
    %850 = vmatpush1.msra.mxu0 0.0
    %851 = vmatprep.subr.mxu0 0.0
    %852 = vmatpush1.msra.mxu0 0.0
    %853 = vmatprep.subr.mxu0 0.0
    %854 = vmatpush1.msra.mxu0 0.0
    %855 = vmatprep.subr.mxu0 0.0
    %856 = vmatpush1.msra.mxu0 0.0
    %857 = vmatprep.subr.mxu0 0.0
    %858 = vmatpush1.msra.mxu0 0.0
    %859 = vmatprep.subr.mxu0 0.0
    %860 = vmatpush1.msra.mxu0 0.0
    %861 = vmatprep.subr.mxu0 0.0
    %862 = vmatpush1.msra.mxu0 0.0
    %863 = vmatprep.subr.mxu0 0.0
    %864 = vmatpush1.msra.mxu0 %v829
    %865 = vmatprep.subr.mxu0 0.0
    %866 = vmatpush1.msra.mxu0 %v828
    %867 = vmatprep.subr.mxu0 0.0
    %868 = vmatpush1.msra.mxu0 %v827
    %869 = vmatprep.subr.mxu0 0.0
    %870 = vmatpush1.msra.mxu0 %v826
    %871 = vmatprep.subr.mxu0 0.0
    %872 = vmatpush2.msra.mxu0 0.0
    %873 = vmatprep.subr.mxu0 0.0
    %874 = vmatpush2.msra.mxu0 0.0
    %875 = vmatprep.subr.mxu0 0.0
    %876 = vmatpush2.msra.mxu0 0.0
    %877 = vmatprep.subr.mxu0 0.0
    %878 = vmatpush2.msra.mxu0 0.0
    %879 = vmatprep.subr.mxu0 0.0
    %880 = vmatpush2.msra.mxu0 0.0
    %881 = vmatprep.subr.mxu0 0.0
    %882 = vmatpush2.msra.mxu0 0.0
    %883 = vmatprep.subr.mxu0 0.0
    %884 = vmatpush2.msra.mxu0 0.0
    %885 = vmatprep.subr.mxu0 0.0
    %886 = vmatpush2.msra.mxu0 0.0
    %887 = vmatprep.subr.mxu0 0.0
    %888 = vmatpush2.msra.mxu0 0.0
    %889 = vmatprep.subr.mxu0 0.0
    %890 = vmatpush2.msra.mxu0 0.0
    %891 = vmatprep.subr.mxu0 0.0
    %892 = vmatpush2.msra.mxu0 0.0
    %893 = vmatprep.subr.mxu0 0.0
    %894 = vmatpush2.msra.mxu0 0.0
    %895 = vmatprep.subr.mxu0 0.0
    %896 = vmatpush2.msra.mxu0 0.0
    %897 = vmatprep.subr.mxu0 0.0
    %898 = vmatpush2.msra.mxu0 0.0
    %899 = vmatprep.subr.mxu0 0.0
    %900 = vmatpush2.msra.mxu0 0.0
    %901 = vmatprep.subr.mxu0 0.0
    %902 = vmatpush2.msra.mxu0 0.0
    %903 = vmatprep.mubr.f32.mxu0 0.0
    %904 = vmatmul.mubr.f32.gmra.mxu0 %v837
    %v905 = vpop.f32.mrf.mxu0
    %v906 = vadd.f32 %v835, %v905
    %v907 = vpop.f32.mrf.mxu0
    %908 = vdwg.mxu0
    %v909 = vsel %vm135, %v906, 0.0
    %910 = vadd.xlane.f32.xlu0 %v909
    %v911 = vpop.xlane.xlu0 %910
    %v912 = vmul.f32 %v911, %v139
    %v913 = vmul.f32 %v906, %v906
    %v914 = vsel %vm135, %v913, 0.0
    %915 = vadd.xlane.f32.xlu0 %v914
    %v916 = vpop.xlane.xlu0 %915
    %v917 = vmul.f32 %v916, %v139
    %v918 = vmul.f32 %v912, %v912
    %v919 = vsub.f32 %v917, %v918
    %v920 = vmax.f32 %v919, 0.0
    %v921 = vsub.f32 %v906, %v912
    %v922 = vadd.f32 %v920, 1e-05
    %v923 = vrsqrt.pop %v922
    %v924 = vmul.f32 %v921, %v923
    %v925 = vlaneseq
    %v926 = vshrl.u32 %v925, 7
    %v927 = vsub.s32 1, %v926
    %v928 = vrot.slane %v831, %v927
    %v929 = vmul.f32 %v924, %v928
    %v930 = vlaneseq
    %v931 = vshrl.u32 %v930, 7
    %v932 = vsub.s32 2, %v931
    %v933 = vrot.slane %v831, %v932
    %v934 = vadd.f32 %v929, %v933
    %v935 = vmax.f32 %v934, 0.0
    %v936 = vld [vmem:[#allocation5] sm:$0xff]
    %v937 = vld [vmem:[#allocation5 + $0x8] sm:$0xff]
    %v938 = vld [vmem:[#allocation5 + $0x10] sm:$0xff]
    %v939 = vld [vmem:[#allocation5 + $0x18] sm:$0xff]
    %s940 = scalar_lea.vmem [#allocation5], 32
    %v941 = vld [vmem:[%s940] sm:$0xff]
    %v942 = vld [vmem:[%s940 + $0x8] sm:$0xff]
    %v943 = vld [vmem:[%s940 + $0x10] sm:$0xff]
    %v944 = vld [vmem:[%s940 + $0x18] sm:$0xff]
    %v946 = vsel %vm135, %v935, 0
    %948 = vmatprep.subr.mxu0 0.0
    %949 = vmatpush1.msra.mxu0 0.0
    %950 = vmatprep.subr.mxu0 0.0
    %951 = vmatpush1.msra.mxu0 0.0
    %952 = vmatprep.subr.mxu0 0.0
    %953 = vmatpush1.msra.mxu0 0.0
    %954 = vmatprep.subr.mxu0 0.0
    %955 = vmatpush1.msra.mxu0 0.0
    %956 = vmatprep.subr.mxu0 0.0
    %957 = vmatpush1.msra.mxu0 0.0
    %958 = vmatprep.subr.mxu0 0.0
    %959 = vmatpush1.msra.mxu0 0.0
    %960 = vmatprep.subr.mxu0 0.0
    %961 = vmatpush1.msra.mxu0 0.0
    %962 = vmatprep.subr.mxu0 0.0
    %963 = vmatpush1.msra.mxu0 0.0
    %964 = vmatprep.subr.mxu0 0.0
    %965 = vmatpush1.msra.mxu0 0.0
    %966 = vmatprep.subr.mxu0 0.0
    %967 = vmatpush1.msra.mxu0 0.0
    %968 = vmatprep.subr.mxu0 0.0
    %969 = vmatpush1.msra.mxu0 0.0
    %970 = vmatprep.subr.mxu0 0.0
    %971 = vmatpush1.msra.mxu0 0.0
    %972 = vmatprep.subr.mxu0 0.0
    %973 = vmatpush1.msra.mxu0 %v944
    %974 = vmatprep.subr.mxu0 0.0
    %975 = vmatpush1.msra.mxu0 %v943
    %976 = vmatprep.subr.mxu0 0.0
    %977 = vmatpush1.msra.mxu0 %v942
    %978 = vmatprep.subr.mxu0 0.0
    %979 = vmatpush1.msra.mxu0 %v941
    %980 = vmatprep.subr.mxu0 0.0
    %981 = vmatpush2.msra.mxu0 0.0
    %982 = vmatprep.subr.mxu0 0.0
    %983 = vmatpush2.msra.mxu0 0.0
    %984 = vmatprep.subr.mxu0 0.0
    %985 = vmatpush2.msra.mxu0 0.0
    %986 = vmatprep.subr.mxu0 0.0
    %987 = vmatpush2.msra.mxu0 0.0
    %988 = vmatprep.subr.mxu0 0.0
    %989 = vmatpush2.msra.mxu0 0.0
    %990 = vmatprep.subr.mxu0 0.0
    %991 = vmatpush2.msra.mxu0 0.0
    %992 = vmatprep.subr.mxu0 0.0
    %993 = vmatpush2.msra.mxu0 0.0
    %994 = vmatprep.subr.mxu0 0.0
    %995 = vmatpush2.msra.mxu0 0.0
    %996 = vmatprep.subr.mxu0 0.0
    %997 = vmatpush2.msra.mxu0 0.0
    %998 = vmatprep.subr.mxu0 0.0
    %999 = vmatpush2.msra.mxu0 0.0
    %1000 = vmatprep.subr.mxu0 0.0
    %1001 = vmatpush2.msra.mxu0 0.0
    %1002 = vmatprep.subr.mxu0 0.0
    %1003 = vmatpush2.msra.mxu0 0.0
    %1004 = vmatprep.subr.mxu0 0.0
    %1005 = vmatpush2.msra.mxu0 0.0
    %1006 = vmatprep.subr.mxu0 0.0
    %1007 = vmatpush2.msra.mxu0 0.0
    %1008 = vmatprep.subr.mxu0 0.0
    %1009 = vmatpush2.msra.mxu0 0.0
    %1010 = vmatprep.subr.mxu0 0.0
    %1011 = vmatpush2.msra.mxu0 0.0
    %1012 = vmatprep.mubr.f32.mxu0 0.0
    %1013 = vmatmul.mubr.f32.gmra.mxu0 %v946
    %v1014 = vpop.f32.mrf.mxu0
    %v1015 = vadd.f32 0.0, %v1014
    %v1016 = vpop.f32.mrf.mxu0
    %1017 = vdwg.mxu0
    %v1019 = vsel %vm135, %v495, 0
    %1021 = vmatprep.subr.mxu0 0.0
    %1022 = vmatpush1.msra.mxu0 0.0
    %1023 = vmatprep.subr.mxu0 0.0
    %1024 = vmatpush1.msra.mxu0 0.0
    %1025 = vmatprep.subr.mxu0 0.0
    %1026 = vmatpush1.msra.mxu0 0.0
    %1027 = vmatprep.subr.mxu0 0.0
    %1028 = vmatpush1.msra.mxu0 0.0
    %1029 = vmatprep.subr.mxu0 0.0
    %1030 = vmatpush1.msra.mxu0 0.0
    %1031 = vmatprep.subr.mxu0 0.0
    %1032 = vmatpush1.msra.mxu0 0.0
    %1033 = vmatprep.subr.mxu0 0.0
    %1034 = vmatpush1.msra.mxu0 0.0
    %1035 = vmatprep.subr.mxu0 0.0
    %1036 = vmatpush1.msra.mxu0 0.0
    %1037 = vmatprep.subr.mxu0 0.0
    %1038 = vmatpush1.msra.mxu0 0.0
    %1039 = vmatprep.subr.mxu0 0.0
    %1040 = vmatpush1.msra.mxu0 0.0
    %1041 = vmatprep.subr.mxu0 0.0
    %1042 = vmatpush1.msra.mxu0 0.0
    %1043 = vmatprep.subr.mxu0 0.0
    %1044 = vmatpush1.msra.mxu0 0.0
    %1045 = vmatprep.subr.mxu0 0.0
    %1046 = vmatpush1.msra.mxu0 %v939
    %1047 = vmatprep.subr.mxu0 0.0
    %1048 = vmatpush1.msra.mxu0 %v938
    %1049 = vmatprep.subr.mxu0 0.0
    %1050 = vmatpush1.msra.mxu0 %v937
    %1051 = vmatprep.subr.mxu0 0.0
    %1052 = vmatpush1.msra.mxu0 %v936
    %1053 = vmatprep.subr.mxu0 0.0
    %1054 = vmatpush2.msra.mxu0 0.0
    %1055 = vmatprep.subr.mxu0 0.0
    %1056 = vmatpush2.msra.mxu0 0.0
    %1057 = vmatprep.subr.mxu0 0.0
    %1058 = vmatpush2.msra.mxu0 0.0
    %1059 = vmatprep.subr.mxu0 0.0
    %1060 = vmatpush2.msra.mxu0 0.0
    %1061 = vmatprep.subr.mxu0 0.0
    %1062 = vmatpush2.msra.mxu0 0.0
    %1063 = vmatprep.subr.mxu0 0.0
    %1064 = vmatpush2.msra.mxu0 0.0
    %1065 = vmatprep.subr.mxu0 0.0
    %1066 = vmatpush2.msra.mxu0 0.0
    %1067 = vmatprep.subr.mxu0 0.0
    %1068 = vmatpush2.msra.mxu0 0.0
    %1069 = vmatprep.subr.mxu0 0.0
    %1070 = vmatpush2.msra.mxu0 0.0
    %1071 = vmatprep.subr.mxu0 0.0
    %1072 = vmatpush2.msra.mxu0 0.0
    %1073 = vmatprep.subr.mxu0 0.0
    %1074 = vmatpush2.msra.mxu0 0.0
    %1075 = vmatprep.subr.mxu0 0.0
    %1076 = vmatpush2.msra.mxu0 0.0
    %1077 = vmatprep.subr.mxu0 0.0
    %1078 = vmatpush2.msra.mxu0 0.0
    %1079 = vmatprep.subr.mxu0 0.0
    %1080 = vmatpush2.msra.mxu0 0.0
    %1081 = vmatprep.subr.mxu0 0.0
    %1082 = vmatpush2.msra.mxu0 0.0
    %1083 = vmatprep.subr.mxu0 0.0
    %1084 = vmatpush2.msra.mxu0 0.0
    %1085 = vmatprep.mubr.f32.mxu0 0.0
    %1086 = vmatmul.mubr.f32.gmra.mxu0 %v1019
    %v1087 = vpop.f32.mrf.mxu0
    %v1088 = vadd.f32 %v1015, %v1087
    %v1089 = vpop.f32.mrf.mxu0
    %1090 = vdwg.mxu0
    %v1091 = vld [vmem:[%s5] sm:$0x1]
    %v1093 = vlaneseq
    %v1094 = vshrl.u32 %v1093, 7
    %v1095 = vsub.s32 0, %v1094
    %v1096 = vrot.slane %v1091, %v1095
    %v1098 = vadd.f32 %v1088, %v1096
    %1099 = vst [vmem:[#allocation7] sm:$0xff] %v1098
    // Predicated region
    $region34: #{tpu_custom_call.1} parent=1 // pred_check
      _
    $region35: #{tpu_custom_call.1} parent=1 // pred_check_branch
      %1101 = sbr.rel (0) target = $region37
    $region36: #{tpu_custom_call.1} parent=1 // pred_region
      %s1103 = ssub.s32 128, 128
      %1104 = vsyncadd [#allocation4], %s1103
      %s1106 = sshll.u32 [#allocation7], 4
      %s1107 = int_to_ptr.vmem [resolvable:$true] %s1106
      %1109 = dma.vmem_to_hbm [thread:$0]  %s1107, 128, %s6, [#allocation4]
    $region37: #{tpu_custom_call.1} parent=1 // pred_fallthru
      _
    // Predicated region
    $region38: #{tpu_custom_call.1} parent=1 // pred_check
      _
    $region39: #{tpu_custom_call.1} parent=1 // pred_check_branch
      %1111 = sbr.rel (0) target = $region41
    $region40: #{tpu_custom_call.1} parent=1 // pred_region
      %1112 = dma.done [#allocation4], 128
    $region41: #{tpu_custom_call.1} parent=1 // pred_fallthru
      _
    %1113 = vsyncpa [#allocation3], 1
    %1114 = vsyncpa [#allocation6], 1
    %1115 = vsyncpa [#allocation4], 1

</llo_original>
